<compile_context>
chip_gen: v7x
topology: tpu7x:2x2x1
jax: 0.10.0
libtpu: 0.0.40
codegen_flags: <defaults>
</compile_context>

<pallas_src>
import functools

import jax
import jax.numpy as jnp
from jax import lax
from jax.experimental import pallas as pl
from jax.experimental.pallas import tpu as pltpu

_LANE = 128
_MIB = 1024 * 1024


def _silu(x):
    # sigmoid(x) == 0.5 * (tanh(x / 2) + 1): one EUP op, no exact divide.
    return x * (0.5 * jnp.tanh(0.5 * x) + 0.5)


def _round_up(x, m):
    return (x + m - 1) // m * m


def _fold_bn(gamma, beta, mean, var, eps=1e-5):
    scale = gamma / jnp.sqrt(var + eps)
    bias = beta - mean * scale
    return scale, bias


# ------------------------------ Pallas kernel -------------------------------


def _dwconv_fused_kernel(xa_ref, dww_ref, dwb_ref, pww_ref, pwb_ref, o_ref,
                         *, K, stride, TH, Wo, Wq, preload_f32):
    """One (batch, row-tile) step: depthwise conv + BN + SiLU, then 1x1 conv
    (MXU matmul) + BN + SiLU, without leaving VMEM.

    xa_ref : (TH + hhalo, SS*Wq, Cp)  overlapping row tile in parity layout
    dww_ref: (K*K, Cp)                f32 depthwise weights (BN scale folded)
    dwb_ref: (1, Cp)                  f32 depthwise folded BN bias
    pww_ref: (Cp, Coutp)              1x1 weights (BN scale folded)
    pwb_ref: (1, Coutp)               f32 1x1 folded BN bias
    o_ref  : (TH, Wo, Coutp)
    """
    Cp = xa_ref.shape[-1]
    w = dww_ref[...]                                    # (K*K, Cp), already f32

    if preload_f32:
        # One dtype convert per element (instead of K*K per element); the tap
        # slices below are static.
        xw = xa_ref[...].astype(jnp.float32)

        def tap(hs, wbase):
            return xw[hs:hs + TH, wbase:wbase + Wo, :]
    else:
        # f32 input: the astype is a trace-time no-op, read taps from the ref.
        def tap(hs, wbase):
            return xa_ref[pl.ds(hs, TH), pl.ds(wbase, Wo), :].astype(jnp.float32)

    # Depthwise conv: K*K shifted multiply-adds with f32 accumulation.  The
    # parity layout makes every tap a contiguous (TH, Wo, Cp) slice.
    acc = jnp.zeros((TH, Wo, Cp), jnp.float32)
    for kh in range(K):
        hs, ph = kh // stride, kh % stride
        for kw in range(K):
            ws, pw = kw // stride, kw % stride
            wbase = (ph * stride + pw) * Wq + ws
            acc = acc + tap(hs, wbase) * w[kh * K + kw]

    y = _silu(acc + dwb_ref[...])                       # (TH, Wo, Cp) f32
    # Feed the MXU in the pointwise-weight dtype; accumulate in f32.
    y = y.astype(pww_ref.dtype).reshape(TH * Wo, Cp)
    z = jnp.dot(y, pww_ref[...], preferred_element_type=jnp.float32)
    z = _silu(z + pwb_ref[...])                         # (TH*Wo, Coutp) f32
    o_ref[...] = z.reshape(TH, Wo, -1).astype(o_ref.dtype)


# ------------------------- tile / VMEM budget helpers ------------------------


def _vmem_caps():
    """(physical VMEM bytes, matmul row cap) for this TPU generation."""
    cap = 128 * _MIB
    try:
        cap = int(getattr(pltpu.get_tpu_info(), "vmem_capacity_bytes", cap))
    except Exception:
        pass
    kind = ""
    try:
        kind = jax.devices()[0].device_kind.lower()
    except Exception:
        pass
    if "v5" in kind:
        row_cap = 2048          # 128-wide MXU, least scoped-VMEM headroom
    elif cap <= 96 * _MIB:
        row_cap = 4096          # v7x: 64 MiB VMEM per TensorCore
    else:
        row_cap = 8192          # v6e: amortize per-step overhead, feed the MXU
    return cap, row_cap


def _pick_row_tile(N, Ho, Wo, SS, Wq, Cp, Coutp, K, hhalo, in_isz, out_isz,
                   requested):
    """Largest Ho-divisor row tile fitting the VMEM budget and row cap."""
    cap, row_cap = _vmem_caps()
    budget = int(cap * 0.6)

    def est(th):
        act_in = 2 * (th + hhalo) * SS * Wq * Cp * in_isz       # double-buffered
        act_out = 2 * th * Wo * Coutp * out_isz                 # double-buffered
        weights = K * K * Cp * 4 + Cp * 4 + Cp * Coutp * in_isz + Coutp * 4
        f32tmp = ((th + hhalo) * SS * Wq * Cp + th * Wo * Cp
                  + th * Wo * Coutp) * 4 + th * Wo * Cp * in_isz
        return act_in + act_out + weights + f32tmp

    min_th = max(hhalo, 1)
    divisors = [d for d in range(1, Ho + 1) if Ho % d == 0 and d >= min_th]
    if not divisors:
        raise NotImplementedError("output height smaller than the conv halo")
    ok = [d for d in divisors if est(d) <= budget and d * Wo <= row_cap]
    if not ok:
        ok = [divisors[0]]                 # smallest legal tile as a fallback
    if N == 1:
        # Keep both TensorCores busy on v7x when batch gives no parallelism.
        multi = [d for d in ok if Ho // d >= 2]
        if multi:
            ok = multi
    if requested is not None:
        cand = [d for d in ok if d <= requested]
        if cand:
            ok = cand
    th = max(ok)
    vmem_limit = int(min(0.8 * cap, max(2 * est(th), 32 * _MIB)))
    return th, vmem_limit


# -------------------------------- Wrapper ------------------------------------


def dwconv_pallas(x_nhwc, dw_w_kkc, dw_scale, dw_bias, pw_w_io, pw_scale,
                  pw_bias, ksize, stride, row_tile=None, matmul_bf16=False):
    """Fused DWConv forward in NHWC: depthwise BaseConv then 1x1 BaseConv."""
    N, H, W, Cin = x_nhwc.shape
    Cout = pw_w_io.shape[1]
    K, s = int(ksize), int(stride)
    pad = (K - 1) // 2
    Ho = (H + 2 * pad - K) // s + 1
    Wo = (W + 2 * pad - K) // s + 1
    hhalo = (K - 1) // s                 # extra rows needed past a row tile
    SS = s * s
    dtype = x_nhwc.dtype

    # Lane-dense channels.
    Cp = _round_up(max(Cin, _LANE), _LANE)
    Coutp = _round_up(max(Cout, _LANE), _LANE)

    # TODO(synk): matmul_bf16=True feeds the MXU bf16 when the model runs f32
    # (~2-4x MXU throughput on v5e); off by default for exact f32 parity.
    mm_dtype = jnp.bfloat16 if (matmul_bf16 and dtype == jnp.float32) else dtype

    Wq = max(Wo + hhalo, -(-(W + 2 * pad) // s))
    in_isz = jnp.dtype(dtype).itemsize
    TH, vmem_limit = _pick_row_tile(N, Ho, Wo, SS, Wq, Cp, Coutp, K, hhalo,
                                    in_isz, in_isz, row_tile)
    n_h = Ho // TH
    TW = TH + hhalo

    # Fold BN scale into the conv weights; pad channels to the lane width.
    dw_w_f = dw_w_kkc.astype(jnp.float32) * dw_scale                 # (K,K,Cin)
    dw_w_p = jnp.pad(dw_w_f, ((0, 0), (0, 0), (0, Cp - Cin))).reshape(K * K, Cp)
    dw_b_p = jnp.pad(dw_bias.astype(jnp.float32), (0, Cp - Cin)).reshape(1, Cp)
    pw_w_f = (pw_w_io.astype(jnp.float32) * pw_scale[None, :]).astype(mm_dtype)
    pw_w_p = jnp.pad(pw_w_f, ((0, Cp - Cin), (0, Coutp - Cout)))
    pw_b_p = jnp.pad(pw_bias.astype(jnp.float32),
                     (0, Coutp - Cout)).reshape(1, Coutp)

    # Zero-pad spatially + channel-wise, then fold the conv stride into a
    # column-parity layout: padded pixel (q*s + ph, r*s + pw) is stored at
    # x_r[n, q, (ph*s + pw)*Wq + r, c], so every depthwise tap becomes a
    # contiguous slice inside the kernel (no strided loads), for any stride.
    Hq = max(n_h * TH + hhalo, -(-(H + 2 * pad) // s))
    assert Hq * s - H - pad >= pad and Wq * s - W - pad >= pad
    x_p = jnp.pad(x_nhwc, ((0, 0),
                           (pad, Hq * s - H - pad),
                           (pad, Wq * s - W - pad),
                           (0, Cp - Cin)))
    if s == 1:
        x_r = x_p                                          # (N, Hq, Wq, Cp)
    else:
        x_r = (x_p.reshape(N, Hq, s, Wq, s, Cp)
               .transpose(0, 1, 2, 4, 3, 5)
               .reshape(N, Hq, SS * Wq, Cp))
    # TODO(synk): in a full network the pad / parity re-layout should be folded
    # into the producing layer's output layout instead of redone per DWConv.

    # Overlapping row tiles: halo rows are baked into each tile so the kernel
    # reads its pipelined block directly (no per-step VMEM scratch copy).
    if hhalo == 0:
        x_tiles = x_r[:, :n_h * TH].reshape(N, n_h, TW, SS * Wq, Cp)
    elif n_h == 1:
        x_tiles = x_r[:, :TW].reshape(N, 1, TW, SS * Wq, Cp)
    else:
        x_tiles = jnp.stack([x_r[:, t * TH:t * TH + TW] for t in range(n_h)],
                            axis=1)

    kern = functools.partial(_dwconv_fused_kernel, K=K, stride=s, TH=TH, Wo=Wo,
                             Wq=Wq, preload_f32=(dtype != jnp.float32))

    def _call(single_buffer_weights):
        def wspec(shape):
            kw = ({"pipeline_mode": pl.Buffered(1)}
                  if single_buffer_weights else {})
            return pl.BlockSpec(shape, lambda n, t: (0,) * len(shape), **kw)

        return pl.pallas_call(
            kern,
            out_shape=jax.ShapeDtypeStruct((N, Ho, Wo, Coutp), dtype),
            grid=(N, n_h),
            in_specs=[
                pl.BlockSpec((None, None, TW, SS * Wq, Cp),
                             lambda n, t: (n, t, 0, 0, 0)),
                wspec((K * K, Cp)),
                wspec((1, Cp)),
                wspec((Cp, Coutp)),
                wspec((1, Coutp)),
            ],
            out_specs=pl.BlockSpec((None, TH, Wo, Coutp),
                                   lambda n, t: (n, t, 0, 0)),
            compiler_params=pltpu.CompilerParams(
                dimension_semantics=("parallel", "parallel"),
                vmem_limit_bytes=vmem_limit),
        )(x_tiles, dw_w_p, dw_b_p, pw_w_p, pw_b_p)

    try:
        out = _call(True)    # constant operands single-buffered (VMEM saving)
    except Exception:        # jax build without BlockSpec.pipeline_mode support
        out = _call(False)
    return out if Coutp == Cout else out[..., :Cout]


def dwconv_forward_nhwc(x_nhwc, params, ksize, stride, row_tile=None,
                        matmul_bf16=False):
    """DWConv.forward on NHWC activations (preferred layout: no transposes)."""
    # depthwise: PyTorch weight (C, 1, K, K) -> (K, K, C)
    dw_w = jnp.transpose(params["dw_w"][:, 0], (1, 2, 0))
    dw_s, dw_b = _fold_bn(params["dw_gamma"], params["dw_beta"],
                          params["dw_mean"], params["dw_var"])
    # pointwise: PyTorch weight (Cout, Cin, 1, 1) -> (Cin, Cout)
    pw_w = jnp.transpose(params["pw_w"][:, :, 0, 0], (1, 0))
    pw_s, pw_b = _fold_bn(params["pw_gamma"], params["pw_beta"],
                          params["pw_mean"], params["pw_var"])
    return dwconv_pallas(x_nhwc, dw_w, dw_s, dw_b, pw_w, pw_s, pw_b,
                         ksize, stride, row_tile=row_tile,
                         matmul_bf16=matmul_bf16)


def dwconv_forward(x_nchw, params, ksize, stride, row_tile=None,
                   matmul_bf16=False):
    """NCHW adapter matching the PyTorch module interface.  In a full network
    keep NHWC end-to-end (dwconv_forward_nhwc) to avoid these two HBM
    transpose passes."""
    x_nhwc = jnp.transpose(x_nchw, (0, 2, 3, 1))                 # NCHW -> NHWC
    z = dwconv_forward_nhwc(x_nhwc, params, ksize, stride, row_tile,
                            matmul_bf16)
    return jnp.transpose(z, (0, 3, 1, 2))                        # NHWC -> NCHW


# --------------------------- params / reference ------------------------------


def init_dwconv_params(key, in_channels, out_channels, ksize):
    """Deterministic parameter init matching the PyTorch module's shapes."""
    ks = jax.random.split(key, 8)
    p = {}
    p["dw_w"] = jax.random.normal(ks[0], (in_channels, 1, ksize, ksize),
                                  jnp.float32) * 0.1
    p["dw_gamma"] = 1.0 + 0.1 * jax.random.normal(ks[1], (in_channels,), jnp.float32)
    p["dw_beta"] = 0.1 * jax.random.normal(ks[2], (in_channels,), jnp.float32)
    p["dw_mean"] = 0.1 * jax.random.normal(ks[3], (in_channels,), jnp.float32)
    p["dw_var"] = jnp.abs(1.0 + 0.1 * jax.random.normal(ks[4], (in_channels,),
                                                        jnp.float32))
    p["pw_w"] = jax.random.normal(ks[5], (out_channels, in_channels, 1, 1),
                                  jnp.float32) * 0.1
    p["pw_gamma"] = 1.0 + 0.1 * jax.random.normal(ks[6], (out_channels,), jnp.float32)
    p["pw_beta"] = 0.1 * jax.random.normal(ks[7], (out_channels,), jnp.float32)
    p["pw_mean"] = jnp.zeros((out_channels,), jnp.float32)
    p["pw_var"] = jnp.ones((out_channels,), jnp.float32)
    return p


def dwconv_reference(x_nchw, params, ksize, stride):
    pad = (ksize - 1) // 2
    C = x_nchw.shape[1]
    dn = ("NCHW", "OIHW", "NCHW")
    y = lax.conv_general_dilated(
        x_nchw, params["dw_w"], window_strides=(stride, stride),
        padding=[(pad, pad), (pad, pad)], feature_group_count=C,
        dimension_numbers=dn)
    s, b = _fold_bn(params["dw_gamma"], params["dw_beta"],
                    params["dw_mean"], params["dw_var"])
    y = y * s[None, :, None, None] + b[None, :, None, None]
    y = y * jax.nn.sigmoid(y)

    z = lax.conv_general_dilated(
        y, params["pw_w"], window_strides=(1, 1), padding=[(0, 0), (0, 0)],
        dimension_numbers=dn)
    s, b = _fold_bn(params["pw_gamma"], params["pw_beta"],
                    params["pw_mean"], params["pw_var"])
    z = z * s[None, :, None, None] + b[None, :, None, None]
    return z * jax.nn.sigmoid(z)


if __name__ == "__main__":
    root = jax.random.PRNGKey(0)

    cases = [
        # (N, Cin, Cout, H, W, ksize, stride, row_tile)
        (2, 4, 8, 16, 16, 3, 1, 8),     # stride 1, 2 overlapping row tiles
        (2, 4, 8, 16, 16, 3, 2, 4),     # stride 2, parity layout + halo
        (1, 4, 8, 16, 16, 3, 1, None),  # batch 1: auto picker (>=2 tiles)
    ]
    for i, (N, Cin, Cout, H, W, K, S, RT) in enumerate(cases):
        kx, kp = jax.random.split(jax.random.fold_in(root, i))
        x = jax.random.normal(kx, (N, Cin, H, W), jnp.float32)   # NCHW input
        params = init_dwconv_params(kp, Cin, Cout, K)

        # Run eagerly so the single-buffer-weights fallback (for jax builds
        # without BlockSpec.pipeline_mode) can be taken at compile time.
        out = jax.block_until_ready(
            dwconv_forward(x, params, ksize=K, stride=S, row_tile=RT))
        ref = dwconv_reference(x, params, K, S)

        pad = (K - 1) // 2
        Ho = (H + 2 * pad - K) // S + 1
        Wo = (W + 2 * pad - K) // S + 1
        assert out.shape == (N, Cout, Ho, Wo), (i, out.shape)
        err = float(jnp.max(jnp.abs(out - ref)))
        assert jnp.allclose(out, ref, atol=1e-4, rtol=1e-4), (i, err)

    print("KERNEL_OK")
</pallas_src>

<mosaic_0001>
module attributes {stable_mosaic.version = 11 : i64} {
  func.func @_dwconv_fused_kernel(%arg0: i32, %arg1: i32, %arg2: memref<1x1x10x18x128xf32, #tpu.memory_space<vmem>>, %arg3: memref<9x128xf32, #tpu.memory_space<vmem>>, %arg4: memref<1x128xf32, #tpu.memory_space<vmem>>, %arg5: memref<128x128xf32, #tpu.memory_space<vmem>>, %arg6: memref<1x128xf32, #tpu.memory_space<vmem>>, %arg7: memref<1x8x16x128xf32, #tpu.memory_space<vmem>>) attributes {dimension_semantics = [#tpu.dimension_semantics<parallel>, #tpu.dimension_semantics<parallel>], iteration_bounds = array<i64: 2, 2>, scalar_prefetch = 0 : i64, scratch_operands = 0 : i64, tpu.core_type = #tpu.core_type<tc>, window_params = [{transform_indices = @transform_0, window_bounds = array<i64: 1, 1, 10, 18, 128>}, {pipeline_mode = #tpu.pipeline_mode<synchronous>, transform_indices = @transform_1, window_bounds = array<i64: 9, 128>}, {pipeline_mode = #tpu.pipeline_mode<synchronous>, transform_indices = @transform_2, window_bounds = array<i64: 1, 128>}, {pipeline_mode = #tpu.pipeline_mode<synchronous>, transform_indices = @transform_3, window_bounds = array<i64: 128, 128>}, {pipeline_mode = #tpu.pipeline_mode<synchronous>, transform_indices = @transform_4, window_bounds = array<i64: 1, 128>}, {transform_indices = @transform_5, window_bounds = array<i64: 1, 8, 16, 128>}]} {
    %c0 = arith.constant 0 : index
    %c0_0 = arith.constant 0 : index
    %0 = vector.load %arg3[%c0, %c0_0] : memref<9x128xf32, #tpu.memory_space<vmem>>, vector<9x128xf32>
    %cst = arith.constant 0.000000e+00 : f32
    %1 = vector.broadcast %cst : f32 to vector<8x16x128xf32>
    %c0_1 = arith.constant 0 : index
    %c0_2 = arith.constant 0 : index
    %c0_3 = arith.constant 0 : index
    %c0_4 = arith.constant 0 : index
    %c0_5 = arith.constant 0 : index
    %2 = vector.load %arg2[%c0_1, %c0_2, %c0_3, %c0_4, %c0_5] : memref<1x1x10x18x128xf32, #tpu.memory_space<vmem>>, vector<1x1x8x16x128xf32>
    %3 = vector.shape_cast %2 : vector<1x1x8x16x128xf32> to vector<8x16x128xf32>
    %4 = vector.extract_strided_slice %0 {offsets = [0, 0], sizes = [1, 128], strides = [1, 1]} : vector<9x128xf32> to vector<1x128xf32>
    %5 = vector.shape_cast %4 : vector<1x128xf32> to vector<128xf32>
    %6 = vector.shape_cast %5 : vector<128xf32> to vector<1x1x128xf32>
    %7 = vector.broadcast %6 : vector<1x1x128xf32> to vector<8x16x128xf32>
    %8 = arith.mulf %3, %7 : vector<8x16x128xf32>
    %9 = arith.addf %1, %8 : vector<8x16x128xf32>
    %c0_6 = arith.constant 0 : index
    %c0_7 = arith.constant 0 : index
    %c0_8 = arith.constant 0 : index
    %c1 = arith.constant 1 : index
    %c0_9 = arith.constant 0 : index
    %10 = vector.load %arg2[%c0_6, %c0_7, %c0_8, %c1, %c0_9] : memref<1x1x10x18x128xf32, #tpu.memory_space<vmem>>, vector<1x1x8x16x128xf32>
    %11 = vector.shape_cast %10 : vector<1x1x8x16x128xf32> to vector<8x16x128xf32>
    %12 = vector.extract_strided_slice %0 {offsets = [1, 0], sizes = [1, 128], strides = [1, 1]} : vector<9x128xf32> to vector<1x128xf32>
    %13 = vector.shape_cast %12 : vector<1x128xf32> to vector<128xf32>
    %14 = vector.shape_cast %13 : vector<128xf32> to vector<1x1x128xf32>
    %15 = vector.broadcast %14 : vector<1x1x128xf32> to vector<8x16x128xf32>
    %16 = arith.mulf %11, %15 : vector<8x16x128xf32>
    %17 = arith.addf %9, %16 : vector<8x16x128xf32>
    %c0_10 = arith.constant 0 : index
    %c0_11 = arith.constant 0 : index
    %c0_12 = arith.constant 0 : index
    %c2 = arith.constant 2 : index
    %c0_13 = arith.constant 0 : index
    %18 = vector.load %arg2[%c0_10, %c0_11, %c0_12, %c2, %c0_13] : memref<1x1x10x18x128xf32, #tpu.memory_space<vmem>>, vector<1x1x8x16x128xf32>
    %19 = vector.shape_cast %18 : vector<1x1x8x16x128xf32> to vector<8x16x128xf32>
    %20 = vector.extract_strided_slice %0 {offsets = [2, 0], sizes = [1, 128], strides = [1, 1]} : vector<9x128xf32> to vector<1x128xf32>
    %21 = vector.shape_cast %20 : vector<1x128xf32> to vector<128xf32>
    %22 = vector.shape_cast %21 : vector<128xf32> to vector<1x1x128xf32>
    %23 = vector.broadcast %22 : vector<1x1x128xf32> to vector<8x16x128xf32>
    %24 = arith.mulf %19, %23 : vector<8x16x128xf32>
    %25 = arith.addf %17, %24 : vector<8x16x128xf32>
    %c0_14 = arith.constant 0 : index
    %c0_15 = arith.constant 0 : index
    %c1_16 = arith.constant 1 : index
    %c0_17 = arith.constant 0 : index
    %c0_18 = arith.constant 0 : index
    %26 = vector.load %arg2[%c0_14, %c0_15, %c1_16, %c0_17, %c0_18] : memref<1x1x10x18x128xf32, #tpu.memory_space<vmem>>, vector<1x1x8x16x128xf32>
    %27 = vector.shape_cast %26 : vector<1x1x8x16x128xf32> to vector<8x16x128xf32>
    %28 = vector.extract_strided_slice %0 {offsets = [3, 0], sizes = [1, 128], strides = [1, 1]} : vector<9x128xf32> to vector<1x128xf32>
    %29 = vector.shape_cast %28 : vector<1x128xf32> to vector<128xf32>
    %30 = vector.shape_cast %29 : vector<128xf32> to vector<1x1x128xf32>
    %31 = vector.broadcast %30 : vector<1x1x128xf32> to vector<8x16x128xf32>
    %32 = arith.mulf %27, %31 : vector<8x16x128xf32>
    %33 = arith.addf %25, %32 : vector<8x16x128xf32>
    %c0_19 = arith.constant 0 : index
    %c0_20 = arith.constant 0 : index
    %c1_21 = arith.constant 1 : index
    %c1_22 = arith.constant 1 : index
    %c0_23 = arith.constant 0 : index
    %34 = vector.load %arg2[%c0_19, %c0_20, %c1_21, %c1_22, %c0_23] : memref<1x1x10x18x128xf32, #tpu.memory_space<vmem>>, vector<1x1x8x16x128xf32>
    %35 = vector.shape_cast %34 : vector<1x1x8x16x128xf32> to vector<8x16x128xf32>
    %36 = vector.extract_strided_slice %0 {offsets = [4, 0], sizes = [1, 128], strides = [1, 1]} : vector<9x128xf32> to vector<1x128xf32>
    %37 = vector.shape_cast %36 : vector<1x128xf32> to vector<128xf32>
    %38 = vector.shape_cast %37 : vector<128xf32> to vector<1x1x128xf32>
    %39 = vector.broadcast %38 : vector<1x1x128xf32> to vector<8x16x128xf32>
    %40 = arith.mulf %35, %39 : vector<8x16x128xf32>
    %41 = arith.addf %33, %40 : vector<8x16x128xf32>
    %c0_24 = arith.constant 0 : index
    %c0_25 = arith.constant 0 : index
    %c1_26 = arith.constant 1 : index
    %c2_27 = arith.constant 2 : index
    %c0_28 = arith.constant 0 : index
    %42 = vector.load %arg2[%c0_24, %c0_25, %c1_26, %c2_27, %c0_28] : memref<1x1x10x18x128xf32, #tpu.memory_space<vmem>>, vector<1x1x8x16x128xf32>
    %43 = vector.shape_cast %42 : vector<1x1x8x16x128xf32> to vector<8x16x128xf32>
    %44 = vector.extract_strided_slice %0 {offsets = [5, 0], sizes = [1, 128], strides = [1, 1]} : vector<9x128xf32> to vector<1x128xf32>
    %45 = vector.shape_cast %44 : vector<1x128xf32> to vector<128xf32>
    %46 = vector.shape_cast %45 : vector<128xf32> to vector<1x1x128xf32>
    %47 = vector.broadcast %46 : vector<1x1x128xf32> to vector<8x16x128xf32>
    %48 = arith.mulf %43, %47 : vector<8x16x128xf32>
    %49 = arith.addf %41, %48 : vector<8x16x128xf32>
    %c0_29 = arith.constant 0 : index
    %c0_30 = arith.constant 0 : index
    %c2_31 = arith.constant 2 : index
    %c0_32 = arith.constant 0 : index
    %c0_33 = arith.constant 0 : index
    %50 = vector.load %arg2[%c0_29, %c0_30, %c2_31, %c0_32, %c0_33] : memref<1x1x10x18x128xf32, #tpu.memory_space<vmem>>, vector<1x1x8x16x128xf32>
    %51 = vector.shape_cast %50 : vector<1x1x8x16x128xf32> to vector<8x16x128xf32>
    %52 = vector.extract_strided_slice %0 {offsets = [6, 0], sizes = [1, 128], strides = [1, 1]} : vector<9x128xf32> to vector<1x128xf32>
    %53 = vector.shape_cast %52 : vector<1x128xf32> to vector<128xf32>
    %54 = vector.shape_cast %53 : vector<128xf32> to vector<1x1x128xf32>
    %55 = vector.broadcast %54 : vector<1x1x128xf32> to vector<8x16x128xf32>
    %56 = arith.mulf %51, %55 : vector<8x16x128xf32>
    %57 = arith.addf %49, %56 : vector<8x16x128xf32>
    %c0_34 = arith.constant 0 : index
    %c0_35 = arith.constant 0 : index
    %c2_36 = arith.constant 2 : index
    %c1_37 = arith.constant 1 : index
    %c0_38 = arith.constant 0 : index
    %58 = vector.load %arg2[%c0_34, %c0_35, %c2_36, %c1_37, %c0_38] : memref<1x1x10x18x128xf32, #tpu.memory_space<vmem>>, vector<1x1x8x16x128xf32>
    %59 = vector.shape_cast %58 : vector<1x1x8x16x128xf32> to vector<8x16x128xf32>
    %60 = vector.extract_strided_slice %0 {offsets = [7, 0], sizes = [1, 128], strides = [1, 1]} : vector<9x128xf32> to vector<1x128xf32>
    %61 = vector.shape_cast %60 : vector<1x128xf32> to vector<128xf32>
    %62 = vector.shape_cast %61 : vector<128xf32> to vector<1x1x128xf32>
    %63 = vector.broadcast %62 : vector<1x1x128xf32> to vector<8x16x128xf32>
    %64 = arith.mulf %59, %63 : vector<8x16x128xf32>
    %65 = arith.addf %57, %64 : vector<8x16x128xf32>
    %c0_39 = arith.constant 0 : index
    %c0_40 = arith.constant 0 : index
    %c2_41 = arith.constant 2 : index
    %c2_42 = arith.constant 2 : index
    %c0_43 = arith.constant 0 : index
    %66 = vector.load %arg2[%c0_39, %c0_40, %c2_41, %c2_42, %c0_43] : memref<1x1x10x18x128xf32, #tpu.memory_space<vmem>>, vector<1x1x8x16x128xf32>
    %67 = vector.shape_cast %66 : vector<1x1x8x16x128xf32> to vector<8x16x128xf32>
    %68 = vector.extract_strided_slice %0 {offsets = [8, 0], sizes = [1, 128], strides = [1, 1]} : vector<9x128xf32> to vector<1x128xf32>
    %69 = vector.shape_cast %68 : vector<1x128xf32> to vector<128xf32>
    %70 = vector.shape_cast %69 : vector<128xf32> to vector<1x1x128xf32>
    %71 = vector.broadcast %70 : vector<1x1x128xf32> to vector<8x16x128xf32>
    %72 = arith.mulf %67, %71 : vector<8x16x128xf32>
    %73 = arith.addf %65, %72 : vector<8x16x128xf32>
    %c0_44 = arith.constant 0 : index
    %c0_45 = arith.constant 0 : index
    %74 = vector.load %arg4[%c0_44, %c0_45] : memref<1x128xf32, #tpu.memory_space<vmem>>, vector<1x128xf32>
    %75 = vector.shape_cast %74 : vector<1x128xf32> to vector<1x1x128xf32>
    %76 = vector.broadcast %75 : vector<1x1x128xf32> to vector<8x16x128xf32>
    %77 = arith.addf %73, %76 : vector<8x16x128xf32>
    %cst_46 = arith.constant 5.000000e-01 : f32
    %78 = vector.broadcast %cst_46 : f32 to vector<8x16x128xf32>
    %79 = arith.mulf %78, %77 : vector<8x16x128xf32>
    %80 = math.tanh %79 : vector<8x16x128xf32>
    %cst_47 = arith.constant 5.000000e-01 : f32
    %81 = vector.broadcast %cst_47 : f32 to vector<8x16x128xf32>
    %82 = arith.mulf %81, %80 : vector<8x16x128xf32>
    %cst_48 = arith.constant 5.000000e-01 : f32
    %83 = vector.broadcast %cst_48 : f32 to vector<8x16x128xf32>
    %84 = arith.addf %82, %83 : vector<8x16x128xf32>
    %85 = arith.mulf %77, %84 : vector<8x16x128xf32>
    %86 = vector.shape_cast %85 : vector<8x16x128xf32> to vector<128x128xf32>
    %c0_49 = arith.constant 0 : index
    %c0_50 = arith.constant 0 : index
    %87 = vector.load %arg5[%c0_49, %c0_50] : memref<128x128xf32, #tpu.memory_space<vmem>>, vector<128x128xf32>
    %cst_51 = arith.constant dense<0.000000e+00> : vector<128x128xf32>
    %88 = tpu.matmul %86, %87, %cst_51 {dimension_numbers = #tpu.dot_dimension_numbers<[1], [0], [0], [1], [0, 0, 1, 1], [], []>} : vector<128x128xf32>, vector<128x128xf32>, vector<128x128xf32> -> vector<128x128xf32>
    %c0_52 = arith.constant 0 : index
    %c0_53 = arith.constant 0 : index
    %89 = vector.load %arg6[%c0_52, %c0_53] : memref<1x128xf32, #tpu.memory_space<vmem>>, vector<1x128xf32>
    %90 = vector.broadcast %89 : vector<1x128xf32> to vector<128x128xf32>
    %91 = arith.addf %88, %90 : vector<128x128xf32>
    %cst_54 = arith.constant 5.000000e-01 : f32
    %92 = vector.broadcast %cst_54 : f32 to vector<128x128xf32>
    %93 = arith.mulf %92, %91 : vector<128x128xf32>
    %94 = math.tanh %93 : vector<128x128xf32>
    %cst_55 = arith.constant 5.000000e-01 : f32
    %95 = vector.broadcast %cst_55 : f32 to vector<128x128xf32>
    %96 = arith.mulf %95, %94 : vector<128x128xf32>
    %cst_56 = arith.constant 5.000000e-01 : f32
    %97 = vector.broadcast %cst_56 : f32 to vector<128x128xf32>
    %98 = arith.addf %96, %97 : vector<128x128xf32>
    %99 = arith.mulf %91, %98 : vector<128x128xf32>
    %100 = vector.shape_cast %99 : vector<128x128xf32> to vector<8x16x128xf32>
    %c0_57 = arith.constant 0 : index
    %c0_58 = arith.constant 0 : index
    %c0_59 = arith.constant 0 : index
    %c0_60 = arith.constant 0 : index
    %101 = vector.load %arg7[%c0_57, %c0_58, %c0_59, %c0_60] : memref<1x8x16x128xf32, #tpu.memory_space<vmem>>, vector<1x8x16x128xf32>
    %102 = vector.shape_cast %101 : vector<1x8x16x128xf32> to vector<8x16x128xf32>
    %103 = vector.shape_cast %100 : vector<8x16x128xf32> to vector<1x8x16x128xf32>
    tpu.vector_store %arg7[%c0_57, %c0_58, %c0_59, %c0_60], %103 {strides = array<i32>} : memref<1x8x16x128xf32, #tpu.memory_space<vmem>>, vector<1x8x16x128xf32>,
    return
  }
  func.func @transform_0(%arg0: i32, %arg1: i32) -> (i32, i32, i32, i32, i32) {
    %c0_i32 = arith.constant 0 : i32
    %c0_i32_0 = arith.constant 0 : i32
    %c0_i32_1 = arith.constant 0 : i32
    %c0_i32_2 = arith.constant 0 : i32
    return %arg0, %arg1, %c0_i32, %c0_i32_0, %c0_i32_1 : i32, i32, i32, i32, i32
  }
  func.func @transform_1(%arg0: i32, %arg1: i32) -> (i32, i32) {
    %c0_i32 = arith.constant 0 : i32
    %c0_i32_0 = arith.constant 0 : i32
    %c0_i32_1 = arith.constant 0 : i32
    return %c0_i32, %c0_i32_0 : i32, i32
  }
  func.func @transform_2(%arg0: i32, %arg1: i32) -> (i32, i32) {
    %c0_i32 = arith.constant 0 : i32
    %c0_i32_0 = arith.constant 0 : i32
    %c0_i32_1 = arith.constant 0 : i32
    return %c0_i32, %c0_i32_0 : i32, i32
  }
  func.func @transform_3(%arg0: i32, %arg1: i32) -> (i32, i32) {
    %c0_i32 = arith.constant 0 : i32
    %c0_i32_0 = arith.constant 0 : i32
    %c0_i32_1 = arith.constant 0 : i32
    return %c0_i32, %c0_i32_0 : i32, i32
  }
  func.func @transform_4(%arg0: i32, %arg1: i32) -> (i32, i32) {
    %c0_i32 = arith.constant 0 : i32
    %c0_i32_0 = arith.constant 0 : i32
    %c0_i32_1 = arith.constant 0 : i32
    return %c0_i32, %c0_i32_0 : i32, i32
  }
  func.func @transform_5(%arg0: i32, %arg1: i32) -> (i32, i32, i32, i32) {
    %c0_i32 = arith.constant 0 : i32
    %c0_i32_0 = arith.constant 0 : i32
    %c0_i32_1 = arith.constant 0 : i32
    return %arg0, %arg1, %c0_i32, %c0_i32_0 : i32, i32, i32, i32
  }
}

module attributes {stable_mosaic.version = 11 : i64} {
  func.func @_dwconv_fused_kernel(%arg0: i32, %arg1: i32, %arg2: memref<1x1x10x18x128xf32, #tpu.memory_space<vmem>>, %arg3: memref<9x128xf32, #tpu.memory_space<vmem>>, %arg4: memref<1x128xf32, #tpu.memory_space<vmem>>, %arg5: memref<128x128xf32, #tpu.memory_space<vmem>>, %arg6: memref<1x128xf32, #tpu.memory_space<vmem>>, %arg7: memref<1x8x16x128xf32, #tpu.memory_space<vmem>>) attributes {dimension_semantics = [#tpu.dimension_semantics<parallel>, #tpu.dimension_semantics<parallel>], iteration_bounds = array<i64: 2, 2>, scalar_prefetch = 0 : i64, scratch_operands = 0 : i64, tpu.core_type = #tpu.core_type<tc>, window_params = [{transform_indices = @transform_0, window_bounds = array<i64: 1, 1, 10, 18, 128>}, {pipeline_mode = #tpu.pipeline_mode<synchronous>, transform_indices = @transform_1, window_bounds = array<i64: 9, 128>}, {pipeline_mode = #tpu.pipeline_mode<synchronous>, transform_indices = @transform_2, window_bounds = array<i64: 1, 128>}, {pipeline_mode = #tpu.pipeline_mode<synchronous>, transform_indices = @transform_3, window_bounds = array<i64: 128, 128>}, {pipeline_mode = #tpu.pipeline_mode<synchronous>, transform_indices = @transform_4, window_bounds = array<i64: 1, 128>}, {transform_indices = @transform_5, window_bounds = array<i64: 1, 8, 16, 128>}]} {
    %c0 = arith.constant 0 : index
    %c0_0 = arith.constant 0 : index
    %0 = vector.load %arg3[%c0, %c0_0] : memref<9x128xf32, #tpu.memory_space<vmem>>, vector<9x128xf32>
    %cst = arith.constant 0.000000e+00 : f32
    %1 = vector.broadcast %cst : f32 to vector<8x16x128xf32>
    %c0_1 = arith.constant 0 : index
    %c0_2 = arith.constant 0 : index
    %c0_3 = arith.constant 0 : index
    %c0_4 = arith.constant 0 : index
    %c0_5 = arith.constant 0 : index
    %2 = vector.load %arg2[%c0_1, %c0_2, %c0_3, %c0_4, %c0_5] : memref<1x1x10x18x128xf32, #tpu.memory_space<vmem>>, vector<1x1x8x16x128xf32>
    %3 = vector.shape_cast %2 : vector<1x1x8x16x128xf32> to vector<8x16x128xf32>
    %4 = vector.extract_strided_slice %0 {offsets = [0, 0], sizes = [1, 128], strides = [1, 1]} : vector<9x128xf32> to vector<1x128xf32>
    %5 = vector.shape_cast %4 : vector<1x128xf32> to vector<128xf32>
    %6 = vector.shape_cast %5 : vector<128xf32> to vector<1x1x128xf32>
    %7 = vector.broadcast %6 : vector<1x1x128xf32> to vector<8x16x128xf32>
    %8 = arith.mulf %3, %7 : vector<8x16x128xf32>
    %9 = arith.addf %1, %8 : vector<8x16x128xf32>
    %c0_6 = arith.constant 0 : index
    %c0_7 = arith.constant 0 : index
    %c0_8 = arith.constant 0 : index
    %c1 = arith.constant 1 : index
    %c0_9 = arith.constant 0 : index
    %10 = vector.load %arg2[%c0_6, %c0_7, %c0_8, %c1, %c0_9] : memref<1x1x10x18x128xf32, #tpu.memory_space<vmem>>, vector<1x1x8x16x128xf32>
    %11 = vector.shape_cast %10 : vector<1x1x8x16x128xf32> to vector<8x16x128xf32>
    %12 = vector.extract_strided_slice %0 {offsets = [1, 0], sizes = [1, 128], strides = [1, 1]} : vector<9x128xf32> to vector<1x128xf32>
    %13 = vector.shape_cast %12 : vector<1x128xf32> to vector<128xf32>
    %14 = vector.shape_cast %13 : vector<128xf32> to vector<1x1x128xf32>
    %15 = vector.broadcast %14 : vector<1x1x128xf32> to vector<8x16x128xf32>
    %16 = arith.mulf %11, %15 : vector<8x16x128xf32>
    %17 = arith.addf %9, %16 : vector<8x16x128xf32>
    %c0_10 = arith.constant 0 : index
    %c0_11 = arith.constant 0 : index
    %c0_12 = arith.constant 0 : index
    %c2 = arith.constant 2 : index
    %c0_13 = arith.constant 0 : index
    %18 = vector.load %arg2[%c0_10, %c0_11, %c0_12, %c2, %c0_13] : memref<1x1x10x18x128xf32, #tpu.memory_space<vmem>>, vector<1x1x8x16x128xf32>
    %19 = vector.shape_cast %18 : vector<1x1x8x16x128xf32> to vector<8x16x128xf32>
    %20 = vector.extract_strided_slice %0 {offsets = [2, 0], sizes = [1, 128], strides = [1, 1]} : vector<9x128xf32> to vector<1x128xf32>
    %21 = vector.shape_cast %20 : vector<1x128xf32> to vector<128xf32>
    %22 = vector.shape_cast %21 : vector<128xf32> to vector<1x1x128xf32>
    %23 = vector.broadcast %22 : vector<1x1x128xf32> to vector<8x16x128xf32>
    %24 = arith.mulf %19, %23 : vector<8x16x128xf32>
    %25 = arith.addf %17, %24 : vector<8x16x128xf32>
    %c0_14 = arith.constant 0 : index
    %c0_15 = arith.constant 0 : index
    %c1_16 = arith.constant 1 : index
    %c0_17 = arith.constant 0 : index
    %c0_18 = arith.constant 0 : index
    %26 = vector.load %arg2[%c0_14, %c0_15, %c1_16, %c0_17, %c0_18] : memref<1x1x10x18x128xf32, #tpu.memory_space<vmem>>, vector<1x1x8x16x128xf32>
    %27 = vector.shape_cast %26 : vector<1x1x8x16x128xf32> to vector<8x16x128xf32>
    %28 = vector.extract_strided_slice %0 {offsets = [3, 0], sizes = [1, 128], strides = [1, 1]} : vector<9x128xf32> to vector<1x128xf32>
    %29 = vector.shape_cast %28 : vector<1x128xf32> to vector<128xf32>
    %30 = vector.shape_cast %29 : vector<128xf32> to vector<1x1x128xf32>
    %31 = vector.broadcast %30 : vector<1x1x128xf32> to vector<8x16x128xf32>
    %32 = arith.mulf %27, %31 : vector<8x16x128xf32>
    %33 = arith.addf %25, %32 : vector<8x16x128xf32>
    %c0_19 = arith.constant 0 : index
    %c0_20 = arith.constant 0 : index
    %c1_21 = arith.constant 1 : index
    %c1_22 = arith.constant 1 : index
    %c0_23 = arith.constant 0 : index
    %34 = vector.load %arg2[%c0_19, %c0_20, %c1_21, %c1_22, %c0_23] : memref<1x1x10x18x128xf32, #tpu.memory_space<vmem>>, vector<1x1x8x16x128xf32>
    %35 = vector.shape_cast %34 : vector<1x1x8x16x128xf32> to vector<8x16x128xf32>
    %36 = vector.extract_strided_slice %0 {offsets = [4, 0], sizes = [1, 128], strides = [1, 1]} : vector<9x128xf32> to vector<1x128xf32>
    %37 = vector.shape_cast %36 : vector<1x128xf32> to vector<128xf32>
    %38 = vector.shape_cast %37 : vector<128xf32> to vector<1x1x128xf32>
    %39 = vector.broadcast %38 : vector<1x1x128xf32> to vector<8x16x128xf32>
    %40 = arith.mulf %35, %39 : vector<8x16x128xf32>
    %41 = arith.addf %33, %40 : vector<8x16x128xf32>
    %c0_24 = arith.constant 0 : index
    %c0_25 = arith.constant 0 : index
    %c1_26 = arith.constant 1 : index
    %c2_27 = arith.constant 2 : index
    %c0_28 = arith.constant 0 : index
    %42 = vector.load %arg2[%c0_24, %c0_25, %c1_26, %c2_27, %c0_28] : memref<1x1x10x18x128xf32, #tpu.memory_space<vmem>>, vector<1x1x8x16x128xf32>
    %43 = vector.shape_cast %42 : vector<1x1x8x16x128xf32> to vector<8x16x128xf32>
    %44 = vector.extract_strided_slice %0 {offsets = [5, 0], sizes = [1, 128], strides = [1, 1]} : vector<9x128xf32> to vector<1x128xf32>
    %45 = vector.shape_cast %44 : vector<1x128xf32> to vector<128xf32>
    %46 = vector.shape_cast %45 : vector<128xf32> to vector<1x1x128xf32>
    %47 = vector.broadcast %46 : vector<1x1x128xf32> to vector<8x16x128xf32>
    %48 = arith.mulf %43, %47 : vector<8x16x128xf32>
    %49 = arith.addf %41, %48 : vector<8x16x128xf32>
    %c0_29 = arith.constant 0 : index
    %c0_30 = arith.constant 0 : index
    %c2_31 = arith.constant 2 : index
    %c0_32 = arith.constant 0 : index
    %c0_33 = arith.constant 0 : index
    %50 = vector.load %arg2[%c0_29, %c0_30, %c2_31, %c0_32, %c0_33] : memref<1x1x10x18x128xf32, #tpu.memory_space<vmem>>, vector<1x1x8x16x128xf32>
    %51 = vector.shape_cast %50 : vector<1x1x8x16x128xf32> to vector<8x16x128xf32>
    %52 = vector.extract_strided_slice %0 {offsets = [6, 0], sizes = [1, 128], strides = [1, 1]} : vector<9x128xf32> to vector<1x128xf32>
    %53 = vector.shape_cast %52 : vector<1x128xf32> to vector<128xf32>
    %54 = vector.shape_cast %53 : vector<128xf32> to vector<1x1x128xf32>
    %55 = vector.broadcast %54 : vector<1x1x128xf32> to vector<8x16x128xf32>
    %56 = arith.mulf %51, %55 : vector<8x16x128xf32>
    %57 = arith.addf %49, %56 : vector<8x16x128xf32>
    %c0_34 = arith.constant 0 : index
    %c0_35 = arith.constant 0 : index
    %c2_36 = arith.constant 2 : index
    %c1_37 = arith.constant 1 : index
    %c0_38 = arith.constant 0 : index
    %58 = vector.load %arg2[%c0_34, %c0_35, %c2_36, %c1_37, %c0_38] : memref<1x1x10x18x128xf32, #tpu.memory_space<vmem>>, vector<1x1x8x16x128xf32>
    %59 = vector.shape_cast %58 : vector<1x1x8x16x128xf32> to vector<8x16x128xf32>
    %60 = vector.extract_strided_slice %0 {offsets = [7, 0], sizes = [1, 128], strides = [1, 1]} : vector<9x128xf32> to vector<1x128xf32>
    %61 = vector.shape_cast %60 : vector<1x128xf32> to vector<128xf32>
    %62 = vector.shape_cast %61 : vector<128xf32> to vector<1x1x128xf32>
    %63 = vector.broadcast %62 : vector<1x1x128xf32> to vector<8x16x128xf32>
    %64 = arith.mulf %59, %63 : vector<8x16x128xf32>
    %65 = arith.addf %57, %64 : vector<8x16x128xf32>
    %c0_39 = arith.constant 0 : index
    %c0_40 = arith.constant 0 : index
    %c2_41 = arith.constant 2 : index
    %c2_42 = arith.constant 2 : index
    %c0_43 = arith.constant 0 : index
    %66 = vector.load %arg2[%c0_39, %c0_40, %c2_41, %c2_42, %c0_43] : memref<1x1x10x18x128xf32, #tpu.memory_space<vmem>>, vector<1x1x8x16x128xf32>
    %67 = vector.shape_cast %66 : vector<1x1x8x16x128xf32> to vector<8x16x128xf32>
    %68 = vector.extract_strided_slice %0 {offsets = [8, 0], sizes = [1, 128], strides = [1, 1]} : vector<9x128xf32> to vector<1x128xf32>
    %69 = vector.shape_cast %68 : vector<1x128xf32> to vector<128xf32>
    %70 = vector.shape_cast %69 : vector<128xf32> to vector<1x1x128xf32>
    %71 = vector.broadcast %70 : vector<1x1x128xf32> to vector<8x16x128xf32>
    %72 = arith.mulf %67, %71 : vector<8x16x128xf32>
    %73 = arith.addf %65, %72 : vector<8x16x128xf32>
    %c0_44 = arith.constant 0 : index
    %c0_45 = arith.constant 0 : index
    %74 = vector.load %arg4[%c0_44, %c0_45] : memref<1x128xf32, #tpu.memory_space<vmem>>, vector<1x128xf32>
    %75 = vector.shape_cast %74 : vector<1x128xf32> to vector<1x1x128xf32>
    %76 = vector.broadcast %75 : vector<1x1x128xf32> to vector<8x16x128xf32>
    %77 = arith.addf %73, %76 : vector<8x16x128xf32>
    %cst_46 = arith.constant 5.000000e-01 : f32
    %78 = vector.broadcast %cst_46 : f32 to vector<8x16x128xf32>
    %79 = arith.mulf %78, %77 : vector<8x16x128xf32>
    %80 = math.tanh %79 : vector<8x16x128xf32>
    %cst_47 = arith.constant 5.000000e-01 : f32
    %81 = vector.broadcast %cst_47 : f32 to vector<8x16x128xf32>
    %82 = arith.mulf %81, %80 : vector<8x16x128xf32>
    %cst_48 = arith.constant 5.000000e-01 : f32
    %83 = vector.broadcast %cst_48 : f32 to vector<8x16x128xf32>
    %84 = arith.addf %82, %83 : vector<8x16x128xf32>
    %85 = arith.mulf %77, %84 : vector<8x16x128xf32>
    %86 = vector.shape_cast %85 : vector<8x16x128xf32> to vector<128x128xf32>
    %c0_49 = arith.constant 0 : index
    %c0_50 = arith.constant 0 : index
    %87 = vector.load %arg5[%c0_49, %c0_50] : memref<128x128xf32, #tpu.memory_space<vmem>>, vector<128x128xf32>
    %cst_51 = arith.constant dense<0.000000e+00> : vector<128x128xf32>
    %88 = tpu.matmul %86, %87, %cst_51 {dimension_numbers = #tpu.dot_dimension_numbers<[1], [0], [0], [1], [0, 0, 1, 1], [], []>} : vector<128x128xf32>, vector<128x128xf32>, vector<128x128xf32> -> vector<128x128xf32>
    %c0_52 = arith.constant 0 : index
    %c0_53 = arith.constant 0 : index
    %89 = vector.load %arg6[%c0_52, %c0_53] : memref<1x128xf32, #tpu.memory_space<vmem>>, vector<1x128xf32>
    %90 = vector.broadcast %89 : vector<1x128xf32> to vector<128x128xf32>
    %91 = arith.addf %88, %90 : vector<128x128xf32>
    %cst_54 = arith.constant 5.000000e-01 : f32
    %92 = vector.broadcast %cst_54 : f32 to vector<128x128xf32>
    %93 = arith.mulf %92, %91 : vector<128x128xf32>
    %94 = math.tanh %93 : vector<128x128xf32>
    %cst_55 = arith.constant 5.000000e-01 : f32
    %95 = vector.broadcast %cst_55 : f32 to vector<128x128xf32>
    %96 = arith.mulf %95, %94 : vector<128x128xf32>
    %cst_56 = arith.constant 5.000000e-01 : f32
    %97 = vector.broadcast %cst_56 : f32 to vector<128x128xf32>
    %98 = arith.addf %96, %97 : vector<128x128xf32>
    %99 = arith.mulf %91, %98 : vector<128x128xf32>
    %100 = vector.shape_cast %99 : vector<128x128xf32> to vector<8x16x128xf32>
    %c0_57 = arith.constant 0 : index
    %c0_58 = arith.constant 0 : index
    %c0_59 = arith.constant 0 : index
    %c0_60 = arith.constant 0 : index
    %101 = vector.load %arg7[%c0_57, %c0_58, %c0_59, %c0_60] : memref<1x8x16x128xf32, #tpu.memory_space<vmem>>, vector<1x8x16x128xf32>
    %102 = vector.shape_cast %101 : vector<1x8x16x128xf32> to vector<8x16x128xf32>
    %103 = vector.shape_cast %100 : vector<8x16x128xf32> to vector<1x8x16x128xf32>
    tpu.vector_store %arg7[%c0_57, %c0_58, %c0_59, %c0_60], %103 {strides = array<i32>} : memref<1x8x16x128xf32, #tpu.memory_space<vmem>>, vector<1x8x16x128xf32>,
    return
  }
  func.func @transform_0(%arg0: i32, %arg1: i32) -> (i32, i32, i32, i32, i32) {
    %c0_i32 = arith.constant 0 : i32
    %c0_i32_0 = arith.constant 0 : i32
    %c0_i32_1 = arith.constant 0 : i32
    %c0_i32_2 = arith.constant 0 : i32
    return %arg0, %arg1, %c0_i32, %c0_i32_0, %c0_i32_1 : i32, i32, i32, i32, i32
  }
  func.func @transform_1(%arg0: i32, %arg1: i32) -> (i32, i32) {
    %c0_i32 = arith.constant 0 : i32
    %c0_i32_0 = arith.constant 0 : i32
    %c0_i32_1 = arith.constant 0 : i32
    return %c0_i32, %c0_i32_0 : i32, i32
  }
  func.func @transform_2(%arg0: i32, %arg1: i32) -> (i32, i32) {
    %c0_i32 = arith.constant 0 : i32
    %c0_i32_0 = arith.constant 0 : i32
    %c0_i32_1 = arith.constant 0 : i32
    return %c0_i32, %c0_i32_0 : i32, i32
  }
  func.func @transform_3(%arg0: i32, %arg1: i32) -> (i32, i32) {
    %c0_i32 = arith.constant 0 : i32
    %c0_i32_0 = arith.constant 0 : i32
    %c0_i32_1 = arith.constant 0 : i32
    return %c0_i32, %c0_i32_0 : i32, i32
  }
  func.func @transform_4(%arg0: i32, %arg1: i32) -> (i32, i32) {
    %c0_i32 = arith.constant 0 : i32
    %c0_i32_0 = arith.constant 0 : i32
    %c0_i32_1 = arith.constant 0 : i32
    return %c0_i32, %c0_i32_0 : i32, i32
  }
  func.func @transform_5(%arg0: i32, %arg1: i32) -> (i32, i32, i32, i32) {
    %c0_i32 = arith.constant 0 : i32
    %c0_i32_0 = arith.constant 0 : i32
    %c0_i32_1 = arith.constant 0 : i32
    return %arg0, %arg1, %c0_i32, %c0_i32_0 : i32, i32, i32, i32
  }
}

</mosaic_0001>

<llo_original>
// kernel: tpu_custom_call.1
$region0: #{tpu_custom_call.1}
  #allocation0 [shape = 'u32[]', space=smem, size = 0x4, offset = 0x4, fixed_abs, tag = 'smem constant byte address 0x4 - core index']
  #allocation1 [shape = 'u32[144,128]{1,0:T(1,128)}', space=vmem, size = 0x12000, scoped, tag = 'internal scratch']
  %s0 = inlined_call_operand.vmem [shape: f32[2,2,10,18,128], index: 0, kind: input, shape index: {}]
  %s1 = inlined_call_operand.vmem [shape: f32[9,128], index: 1, kind: input, shape index: {}]
  %s2 = inlined_call_operand.vmem [shape: f32[1,128], index: 2, kind: input, shape index: {}]
  %s3 = inlined_call_operand.vmem [shape: f32[128,128], index: 3, kind: input, shape index: {}]
  %s4 = inlined_call_operand.vmem [shape: f32[1,128], index: 4, kind: input, shape index: {}]
  %s5 = inlined_call_operand.hbm [shape: f32[2,16,16,128], index: 5, kind: output, shape index: {}]
  %s6 = sld [smem:[#allocation0]]
  $region53: #{tpu_custom_call.1} parent=0
    _
  %s8 = ssub.s32 1, %s6
  %s9 = scalar_select 0, %s8, %s6
  $region1: #{tpu_custom_call.1} parent=0
    #allocation2 [shape = 'u8[131072]{0}', space=vmem, size = 0x20000, scoped, tag = 'output window, operand 0']
    #allocation3 [shape = 's32[2]{0}', space=sflag, size = 0x8, scoped, tag = 'scoped memory for tpu_custom_call.1']
    %10 = vsyncpa [#allocation3], 0
    %s11 = scalar_lea.sflag [#allocation3], 1
    %12 = vsyncpa %s11, 0
    loop: start=0, step=1, limit=6
    $region2: #{tpu_custom_call.1} parent=1 // loop_pre_header
      _
    $region3: #{tpu_custom_call.1} parent=1 // loop_header
      %s14 = sphi 0, %s18
      %p15 = scmp.ge.s32.totalorder %s14, 6
      %s21 = sphi 0, %s33
      %s22 = sphi 0, %s29
      %s23 = sphi 0, %s21
      %s24 = sphi 0, %s22
      %s25 = sphi 0, %s23
      %s26 = sphi 0, %s24
      %s38 = sphi 0, %s40
      %s41 = sphi 0, %s38
      %s42 = sphi 0, %s41
      %s58 = sphi 0, %s42
      %s62 = sphi 0, %s62
      %s64 = sphi 0, %s62
      %s65 = sphi 0, %s64
      %s79 = sphi 0, %s65
      %s83 = sphi 0, %s83
      %s85 = sphi 0, %s83
      %s86 = sphi 0, %s85
      %s100 = sphi 0, %s86
      %s104 = sphi 0, %s104
      %s106 = sphi 0, %s104
      %s107 = sphi 0, %s106
      %s121 = sphi 0, %s107
      %s125 = sphi 0, %s125
      %s127 = sphi 0, %s125
      %s128 = sphi 0, %s127
      %s142 = sphi 0, %s128
      %s150 = sphi 0, %s152
      %s153 = sphi 0, %s150
      %s154 = sphi 0, %s153
      %s170 = sphi 0, %s154
    $region4: #{tpu_custom_call.1} parent=1 // loop_header_branch
      %17 = sbr.rel (%p15) target = $region8
    $region5: #{tpu_custom_call.1} parent=1 // loop_body
      %s19 = ssub.s32 %s14, 1
      %s20 = ssub.s32 %s14, 2
      %s27 = sadd.s32 1, %s22
      %p28 = scmp.ge.s32.totalorder %s27, 2
      %s29 = scalar_select %p28, 0, %s27
      %s30 = sadd.s32 1, %s21
      %s31 = scalar_select %p28, %s30, %s21
      %p32 = scmp.ge.s32.totalorder %s31, 2
      %s33 = scalar_select %p32, 0, %s31
      %s34 = ssub.s32 %s21, %s33
      %s35 = ssub.s32 %s22, %s29
      %s36 = sor.u32 %s34, %s35
      %p37 = scmp.eq.s32.totalorder %s36, 0
      %s39 = sadd.s32 %s38, 1
      %s40 = scalar_select %p37, %s38, %s39
      %p43 = pneg %p37
      %p44 = scmp.eq.s32.totalorder %s14, 3
      %p45 = por %p43, %p44
      %p46 = scmp.ne.s32.totalorder %s38, %s41
      %p47 = scmp.eq.s32.totalorder %s14, 0
      %p48 = por %p46, %p47
      %p49 = scmp.ne.s32.totalorder %s38, %s41
      %p50 = scmp.eq.s32.totalorder %s19, 3
      %p51 = por %p49, %p50
      %p52 = scmp.ne.s32.totalorder %s41, %s42
      %p53 = scmp.eq.s32.totalorder %s19, 0
      %p54 = por %p52, %p53
      %p55 = scmp.ne.s32.totalorder %s41, %s42
      %p56 = scmp.eq.s32.totalorder %s20, 3
      %p57 = por %p55, %p56
      %p59 = scmp.ne.s32.totalorder %s42, %s58
      %p60 = scmp.eq.s32.totalorder %s20, 0
      %p61 = por %p59, %p60
      %s63 = sadd.s32 %s62, 1
      %p66 = scmp.eq.s32.totalorder %s14, 3
      %p67 = scmp.ne.s32.totalorder %s62, %s64
      %p68 = scmp.eq.s32.totalorder %s14, 0
      %p69 = por %p67, %p68
      %p70 = scmp.ne.s32.totalorder %s62, %s64
      %p71 = scmp.eq.s32.totalorder %s19, 3
      %p72 = por %p70, %p71
      %p73 = scmp.ne.s32.totalorder %s64, %s65
      %p74 = scmp.eq.s32.totalorder %s19, 0
      %p75 = por %p73, %p74
      %p76 = scmp.ne.s32.totalorder %s64, %s65
      %p77 = scmp.eq.s32.totalorder %s20, 3
      %p78 = por %p76, %p77
      %p80 = scmp.ne.s32.totalorder %s65, %s79
      %p81 = scmp.eq.s32.totalorder %s20, 0
      %p82 = por %p80, %p81
      %s84 = sadd.s32 %s83, 1
      %p87 = scmp.eq.s32.totalorder %s14, 3
      %p88 = scmp.ne.s32.totalorder %s83, %s85
      %p89 = scmp.eq.s32.totalorder %s14, 0
      %p90 = por %p88, %p89
      %p91 = scmp.ne.s32.totalorder %s83, %s85
      %p92 = scmp.eq.s32.totalorder %s19, 3
      %p93 = por %p91, %p92
      %p94 = scmp.ne.s32.totalorder %s85, %s86
      %p95 = scmp.eq.s32.totalorder %s19, 0
      %p96 = por %p94, %p95
      %p97 = scmp.ne.s32.totalorder %s85, %s86
      %p98 = scmp.eq.s32.totalorder %s20, 3
      %p99 = por %p97, %p98
      %p101 = scmp.ne.s32.totalorder %s86, %s100
      %p102 = scmp.eq.s32.totalorder %s20, 0
      %p103 = por %p101, %p102
      %s105 = sadd.s32 %s104, 1
      %p108 = scmp.eq.s32.totalorder %s14, 3
      %p109 = scmp.ne.s32.totalorder %s104, %s106
      %p110 = scmp.eq.s32.totalorder %s14, 0
      %p111 = por %p109, %p110
      %p112 = scmp.ne.s32.totalorder %s104, %s106
      %p113 = scmp.eq.s32.totalorder %s19, 3
      %p114 = por %p112, %p113
      %p115 = scmp.ne.s32.totalorder %s106, %s107
      %p116 = scmp.eq.s32.totalorder %s19, 0
      %p117 = por %p115, %p116
      %p118 = scmp.ne.s32.totalorder %s106, %s107
      %p119 = scmp.eq.s32.totalorder %s20, 3
      %p120 = por %p118, %p119
      %p122 = scmp.ne.s32.totalorder %s107, %s121
      %p123 = scmp.eq.s32.totalorder %s20, 0
      %p124 = por %p122, %p123
      %s126 = sadd.s32 %s125, 1
      %p129 = scmp.eq.s32.totalorder %s14, 3
      %p130 = scmp.ne.s32.totalorder %s125, %s127
      %p131 = scmp.eq.s32.totalorder %s14, 0
      %p132 = por %p130, %p131
      %p133 = scmp.ne.s32.totalorder %s125, %s127
      %p134 = scmp.eq.s32.totalorder %s19, 3
      %p135 = por %p133, %p134
      %p136 = scmp.ne.s32.totalorder %s127, %s128
      %p137 = scmp.eq.s32.totalorder %s19, 0
      %p138 = por %p136, %p137
      %p139 = scmp.ne.s32.totalorder %s127, %s128
      %p140 = scmp.eq.s32.totalorder %s20, 3
      %p141 = por %p139, %p140
      %p143 = scmp.ne.s32.totalorder %s128, %s142
      %p144 = scmp.eq.s32.totalorder %s20, 0
      %p145 = por %p143, %p144
      %s146 = ssub.s32 %s21, %s33
      %s147 = ssub.s32 %s22, %s29
      %s148 = sor.u32 %s146, %s147
      %p149 = scmp.eq.s32.totalorder %s148, 0
      %s151 = sadd.s32 %s150, 1
      %s152 = scalar_select %p149, %s150, %s151
      %p155 = pneg %p149
      %p156 = scmp.eq.s32.totalorder %s14, 3
      %p157 = por %p155, %p156
      %p158 = scmp.ne.s32.totalorder %s150, %s153
      %p159 = scmp.eq.s32.totalorder %s14, 0
      %p160 = por %p158, %p159
      %p161 = scmp.ne.s32.totalorder %s150, %s153
      %p162 = scmp.eq.s32.totalorder %s19, 3
      %p163 = por %p161, %p162
      %p164 = scmp.ne.s32.totalorder %s153, %s154
      %p165 = scmp.eq.s32.totalorder %s19, 0
      %p166 = por %p164, %p165
      %p167 = scmp.ne.s32.totalorder %s153, %s154
      %p168 = scmp.eq.s32.totalorder %s20, 3
      %p169 = por %p167, %p168
      %p171 = scmp.ne.s32.totalorder %s154, %s170
      %p172 = scmp.eq.s32.totalorder %s20, 0
      %p173 = por %p171, %p172
      %p174 = scmp.le.s32.totalorder 1, %s14
      %p175 = scmp.lt.s32.totalorder %s14, 5
      %p176 = pnand %p174, %p175
      %p177 = pneg %p176
      // Predicated region
      $region9: #{tpu_custom_call.1} parent=5 // pred_check
        _
      $region10: #{tpu_custom_call.1} parent=5 // pred_check_branch
        %179 = sbr.rel (%p176) target = $region12
      $region11: #{tpu_custom_call.1} parent=5 // pred_region
        %s180 = ssub.s32 %s14, 1
        // Predicated region
        $region13: #{tpu_custom_call.1} parent=11 // pred_check
          %p181 = pneg %p75
        $region14: #{tpu_custom_call.1} parent=11 // pred_check_branch
          %183 = sbr.rel (%p181) target = $region16
        $region15: #{tpu_custom_call.1} parent=11 // pred_region
          _
        $region16: #{tpu_custom_call.1} parent=11 // pred_fallthru
          _
        // Predicated region
        $region17: #{tpu_custom_call.1} parent=11 // pred_check
          %p184 = pneg %p96
        $region18: #{tpu_custom_call.1} parent=11 // pred_check_branch
          %186 = sbr.rel (%p184) target = $region20
        $region19: #{tpu_custom_call.1} parent=11 // pred_region
          _
        $region20: #{tpu_custom_call.1} parent=11 // pred_fallthru
          _
        // Predicated region
        $region21: #{tpu_custom_call.1} parent=11 // pred_check
          %p187 = pneg %p117
        $region22: #{tpu_custom_call.1} parent=11 // pred_check_branch
          %189 = sbr.rel (%p187) target = $region24
        $region23: #{tpu_custom_call.1} parent=11 // pred_region
          _
        $region24: #{tpu_custom_call.1} parent=11 // pred_fallthru
          _
        // Predicated region
        $region25: #{tpu_custom_call.1} parent=11 // pred_check
          %p190 = pneg %p138
        $region26: #{tpu_custom_call.1} parent=11 // pred_check_branch
          %192 = sbr.rel (%p190) target = $region28
        $region27: #{tpu_custom_call.1} parent=11 // pred_region
          _
        $region28: #{tpu_custom_call.1} parent=11 // pred_fallthru
          _
      $region12: #{tpu_custom_call.1} parent=5 // pred_fallthru
        _
      %p193 = scmp.lt.s32.totalorder %s14, 4
      // Predicated region
      $region29: #{tpu_custom_call.1} parent=5 // pred_check
        %p194 = pneg %p193
      $region30: #{tpu_custom_call.1} parent=5 // pred_check_branch
        %196 = sbr.rel (%p194) target = $region32
      $region31: #{tpu_custom_call.1} parent=5 // pred_region
        // Predicated region
        $region33: #{tpu_custom_call.1} parent=31 // pred_check
          %p197 = pneg %p48
        $region34: #{tpu_custom_call.1} parent=31 // pred_check_branch
          %199 = sbr.rel (%p197) target = $region36
        $region35: #{tpu_custom_call.1} parent=31 // pred_region
          %p200 = scmp.lt.s32.totalorder %s21, 1
          %s201 = scalar_select %p200, %s21, 1
          %p202 = scmp.lt.s32.totalorder %s22, 1
          %s203 = scalar_select %p202, %s22, 1
          %s204 = smul.addr %s203, 30
          %s205 = smul.addr %s201, 60
          %s206 = sadd.s32 %s204, %s205
          %s207 = smul.addr %s206, 8
          %s208 = scalar_lea.vmem %s0, %s207
        $region36: #{tpu_custom_call.1} parent=31 // pred_fallthru
          _
      $region32: #{tpu_custom_call.1} parent=5 // pred_fallthru
        _
      %p209 = scmp.le.s32.totalorder 1, %s14
      %p210 = scmp.lt.s32.totalorder %s14, 5
      %p211 = pnand %p209, %p210
      %p212 = pneg %p211
      // Predicated region
      $region37: #{tpu_custom_call.1} parent=5 // pred_check
        _
      $region38: #{tpu_custom_call.1} parent=5 // pred_check_branch
        %214 = sbr.rel (%p211) target = $region40
      $region39: #{tpu_custom_call.1} parent=5 // pred_region
        %s215 = ssub.s32 %s14, 1
        %p216 = scmp.lt.s32.totalorder %s23, 1
        %s217 = scalar_select %p216, %s23, 1
        %p218 = scmp.lt.s32.totalorder %s24, 1
        %s219 = scalar_select %p218, %s24, 1
        %s220 = smul.addr %s219, 30
        %s221 = smul.addr %s217, 60
        %s222 = sadd.s32 %s220, %s221
        %s223 = smul.addr %s222, 8
        %s224 = scalar_lea.vmem %s0, %s223
        %p225 = pneg %p54
        %p226 = pneg %p51
        %p227 = pneg %p75
        %p228 = pneg %p72
        %p229 = pneg %p96
        %p230 = pneg %p93
        %p231 = pneg %p117
        %p232 = pneg %p114
        %p233 = pneg %p138
        %p234 = pneg %p135
        %p235 = pneg %p166
        %p236 = pneg %p163
        %s237 = sand.u32 %s153, 1
        %s238 = scalar_lea.sflag [#allocation3], %s237
        %s239 = sand.u32 %s153, 1
        %s240 = smul.addr %s239, 128
        %s241 = scalar_lea.vmem [#allocation2], %s240
        %p242 = scmp.lt.s32.totalorder %s23, 1
        %s243 = scalar_select %p242, %s23, 1
        %p244 = scmp.lt.s32.totalorder %s24, 1
        %s245 = scalar_select %p244, %s24, 1
        %s246 = smul.addr %s245, 30
        %s247 = smul.addr %s243, 60
        %s248 = sadd.s32 %s246, %s247
        %s249 = smul.addr %s248, 8
        %s250 = scalar_lea.vmem %s0, %s249
        %s251 = smul.u32 8, %s24
        %v252 = vld [vmem:[%s1] sm:$0xff]
        %v253 = vld [vmem:[%s1 + $0x8] sm:$0x1]
        %v254 = vld [vmem:[%s250] sm:$0xff]
        %v255 = vld [vmem:[%s250 + $0x8] sm:$0xff]
        %v256 = vld [vmem:[%s250 + $0x18] sm:$0xff]
        %v257 = vld [vmem:[%s250 + $0x20] sm:$0xff]
        %v258 = vld [vmem:[%s250 + $0x30] sm:$0xff]
        %v259 = vld [vmem:[%s250 + $0x38] sm:$0xff]
        %v260 = vld [vmem:[%s250 + $0x48] sm:$0xff]
        %v261 = vld [vmem:[%s250 + $0x50] sm:$0xff]
        %v262 = vld [vmem:[%s250 + $0x60] sm:$0xff]
        %v263 = vld [vmem:[%s250 + $0x68] sm:$0xff]
        %v264 = vld [vmem:[%s250 + $0x78] sm:$0xff]
        %v265 = vld [vmem:[%s250 + $0x80] sm:$0xff]
        %v266 = vld [vmem:[%s250 + $0x90] sm:$0xff]
        %v267 = vld [vmem:[%s250 + $0x98] sm:$0xff]
        %v268 = vld [vmem:[%s250 + $0xa8] sm:$0xff]
        %v269 = vld [vmem:[%s250 + $0xb0] sm:$0xff]
        %v270 = vlaneseq
        %v271 = vshrl.u32 %v270, 7
        %v272 = vsub.s32 0, %v271
        %v273 = vrot.slane %v252, %v272
        %v274 = vmul.f32 %v254, %v273
        %v275 = vmul.f32 %v255, %v273
        %v276 = vmul.f32 %v256, %v273
        %v277 = vmul.f32 %v257, %v273
        %v278 = vmul.f32 %v258, %v273
        %v279 = vmul.f32 %v259, %v273
        %v280 = vmul.f32 %v260, %v273
        %v281 = vmul.f32 %v261, %v273
        %v282 = vmul.f32 %v262, %v273
        %v283 = vmul.f32 %v263, %v273
        %v284 = vmul.f32 %v264, %v273
        %v285 = vmul.f32 %v265, %v273
        %v286 = vmul.f32 %v266, %v273
        %v287 = vmul.f32 %v267, %v273
        %v288 = vmul.f32 %v268, %v273
        %v289 = vmul.f32 %v269, %v273
        %v290 = vadd.f32 %v274, 0.0
        %v291 = vadd.f32 %v275, 0.0
        %v292 = vadd.f32 %v276, 0.0
        %v293 = vadd.f32 %v277, 0.0
        %v294 = vadd.f32 %v278, 0.0
        %v295 = vadd.f32 %v279, 0.0
        %v296 = vadd.f32 %v280, 0.0
        %v297 = vadd.f32 %v281, 0.0
        %v298 = vadd.f32 %v282, 0.0
        %v299 = vadd.f32 %v283, 0.0
        %v300 = vadd.f32 %v284, 0.0
        %v301 = vadd.f32 %v285, 0.0
        %v302 = vadd.f32 %v286, 0.0
        %v303 = vadd.f32 %v287, 0.0
        %v304 = vadd.f32 %v288, 0.0
        %v305 = vadd.f32 %v289, 0.0
        %v306 = vld [vmem:[%s250 + $0x1] sm:$0xff]
        %v307 = vld [vmem:[%s250 + $0x9] sm:$0xff]
        %v308 = vld [vmem:[%s250 + $0x19] sm:$0xff]
        %v309 = vld [vmem:[%s250 + $0x21] sm:$0xff]
        %v310 = vld [vmem:[%s250 + $0x31] sm:$0xff]
        %v311 = vld [vmem:[%s250 + $0x39] sm:$0xff]
        %v312 = vld [vmem:[%s250 + $0x49] sm:$0xff]
        %v313 = vld [vmem:[%s250 + $0x51] sm:$0xff]
        %v314 = vld [vmem:[%s250 + $0x61] sm:$0xff]
        %v315 = vld [vmem:[%s250 + $0x69] sm:$0xff]
        %v316 = vld [vmem:[%s250 + $0x79] sm:$0xff]
        %v317 = vld [vmem:[%s250 + $0x81] sm:$0xff]
        %v318 = vld [vmem:[%s250 + $0x91] sm:$0xff]
        %v319 = vld [vmem:[%s250 + $0x99] sm:$0xff]
        %v320 = vld [vmem:[%s250 + $0xa9] sm:$0xff]
        %v321 = vld [vmem:[%s250 + $0xb1] sm:$0xff]
        %v322 = vlaneseq
        %v323 = vshrl.u32 %v322, 7
        %v324 = vsub.s32 1, %v323
        %v325 = vrot.slane %v252, %v324
        %v326 = vmul.f32 %v306, %v325
        %v327 = vmul.f32 %v307, %v325
        %v328 = vmul.f32 %v308, %v325
        %v329 = vmul.f32 %v309, %v325
        %v330 = vmul.f32 %v310, %v325
        %v331 = vmul.f32 %v311, %v325
        %v332 = vmul.f32 %v312, %v325
        %v333 = vmul.f32 %v313, %v325
        %v334 = vmul.f32 %v314, %v325
        %v335 = vmul.f32 %v315, %v325
        %v336 = vmul.f32 %v316, %v325
        %v337 = vmul.f32 %v317, %v325
        %v338 = vmul.f32 %v318, %v325
        %v339 = vmul.f32 %v319, %v325
        %v340 = vmul.f32 %v320, %v325
        %v341 = vmul.f32 %v321, %v325
        %v342 = vadd.f32 %v290, %v326
        %v343 = vadd.f32 %v291, %v327
        %v344 = vadd.f32 %v292, %v328
        %v345 = vadd.f32 %v293, %v329
        %v346 = vadd.f32 %v294, %v330
        %v347 = vadd.f32 %v295, %v331
        %v348 = vadd.f32 %v296, %v332
        %v349 = vadd.f32 %v297, %v333
        %v350 = vadd.f32 %v298, %v334
        %v351 = vadd.f32 %v299, %v335
        %v352 = vadd.f32 %v300, %v336
        %v353 = vadd.f32 %v301, %v337
        %v354 = vadd.f32 %v302, %v338
        %v355 = vadd.f32 %v303, %v339
        %v356 = vadd.f32 %v304, %v340
        %v357 = vadd.f32 %v305, %v341
        %v358 = vld [vmem:[%s250 + $0x2] sm:$0xff]
        %v359 = vld [vmem:[%s250 + $0xa] sm:$0xff]
        %v360 = vld [vmem:[%s250 + $0x1a] sm:$0xff]
        %v361 = vld [vmem:[%s250 + $0x22] sm:$0xff]
        %v362 = vld [vmem:[%s250 + $0x32] sm:$0xff]
        %v363 = vld [vmem:[%s250 + $0x3a] sm:$0xff]
        %v364 = vld [vmem:[%s250 + $0x4a] sm:$0xff]
        %v365 = vld [vmem:[%s250 + $0x52] sm:$0xff]
        %v366 = vld [vmem:[%s250 + $0x62] sm:$0xff]
        %v367 = vld [vmem:[%s250 + $0x6a] sm:$0xff]
        %v368 = vld [vmem:[%s250 + $0x7a] sm:$0xff]
        %v369 = vld [vmem:[%s250 + $0x82] sm:$0xff]
        %v370 = vld [vmem:[%s250 + $0x92] sm:$0xff]
        %v371 = vld [vmem:[%s250 + $0x9a] sm:$0xff]
        %v372 = vld [vmem:[%s250 + $0xaa] sm:$0xff]
        %v373 = vld [vmem:[%s250 + $0xb2] sm:$0xff]
        %v374 = vlaneseq
        %v375 = vshrl.u32 %v374, 7
        %v376 = vsub.s32 2, %v375
        %v377 = vrot.slane %v252, %v376
        %v378 = vmul.f32 %v358, %v377
        %v379 = vmul.f32 %v359, %v377
        %v380 = vmul.f32 %v360, %v377
        %v381 = vmul.f32 %v361, %v377
        %v382 = vmul.f32 %v362, %v377
        %v383 = vmul.f32 %v363, %v377
        %v384 = vmul.f32 %v364, %v377
        %v385 = vmul.f32 %v365, %v377
        %v386 = vmul.f32 %v366, %v377
        %v387 = vmul.f32 %v367, %v377
        %v388 = vmul.f32 %v368, %v377
        %v389 = vmul.f32 %v369, %v377
        %v390 = vmul.f32 %v370, %v377
        %v391 = vmul.f32 %v371, %v377
        %v392 = vmul.f32 %v372, %v377
        %v393 = vmul.f32 %v373, %v377
        %v394 = vadd.f32 %v342, %v378
        %v395 = vadd.f32 %v343, %v379
        %v396 = vadd.f32 %v344, %v380
        %v397 = vadd.f32 %v345, %v381
        %v398 = vadd.f32 %v346, %v382
        %v399 = vadd.f32 %v347, %v383
        %v400 = vadd.f32 %v348, %v384
        %v401 = vadd.f32 %v349, %v385
        %v402 = vadd.f32 %v350, %v386
        %v403 = vadd.f32 %v351, %v387
        %v404 = vadd.f32 %v352, %v388
        %v405 = vadd.f32 %v353, %v389
        %v406 = vadd.f32 %v354, %v390
        %v407 = vadd.f32 %v355, %v391
        %v408 = vadd.f32 %v356, %v392
        %v409 = vadd.f32 %v357, %v393
        %s410 = scalar_lea.vmem %s250, 24
        %v411 = vld [vmem:[%s410] sm:$0xff]
        %v412 = vld [vmem:[%s410 + $0x8] sm:$0xff]
        %v413 = vld [vmem:[%s410 + $0x18] sm:$0xff]
        %v414 = vld [vmem:[%s410 + $0x20] sm:$0xff]
        %v415 = vld [vmem:[%s410 + $0x30] sm:$0xff]
        %v416 = vld [vmem:[%s410 + $0x38] sm:$0xff]
        %v417 = vld [vmem:[%s410 + $0x48] sm:$0xff]
        %v418 = vld [vmem:[%s410 + $0x50] sm:$0xff]
        %v419 = vld [vmem:[%s410 + $0x60] sm:$0xff]
        %v420 = vld [vmem:[%s410 + $0x68] sm:$0xff]
        %v421 = vld [vmem:[%s410 + $0x78] sm:$0xff]
        %v422 = vld [vmem:[%s410 + $0x80] sm:$0xff]
        %v423 = vld [vmem:[%s410 + $0x90] sm:$0xff]
        %v424 = vld [vmem:[%s410 + $0x98] sm:$0xff]
        %v425 = vld [vmem:[%s410 + $0xa8] sm:$0xff]
        %v426 = vld [vmem:[%s410 + $0xb0] sm:$0xff]
        %v427 = vlaneseq
        %v428 = vshrl.u32 %v427, 7
        %v429 = vsub.s32 3, %v428
        %v430 = vrot.slane %v252, %v429
        %v431 = vmul.f32 %v411, %v430
        %v432 = vmul.f32 %v412, %v430
        %v433 = vmul.f32 %v413, %v430
        %v434 = vmul.f32 %v414, %v430
        %v435 = vmul.f32 %v415, %v430
        %v436 = vmul.f32 %v416, %v430
        %v437 = vmul.f32 %v417, %v430
        %v438 = vmul.f32 %v418, %v430
        %v439 = vmul.f32 %v419, %v430
        %v440 = vmul.f32 %v420, %v430
        %v441 = vmul.f32 %v421, %v430
        %v442 = vmul.f32 %v422, %v430
        %v443 = vmul.f32 %v423, %v430
        %v444 = vmul.f32 %v424, %v430
        %v445 = vmul.f32 %v425, %v430
        %v446 = vmul.f32 %v426, %v430
        %v447 = vadd.f32 %v394, %v431
        %v448 = vadd.f32 %v395, %v432
        %v449 = vadd.f32 %v396, %v433
        %v450 = vadd.f32 %v397, %v434
        %v451 = vadd.f32 %v398, %v435
        %v452 = vadd.f32 %v399, %v436
        %v453 = vadd.f32 %v400, %v437
        %v454 = vadd.f32 %v401, %v438
        %v455 = vadd.f32 %v402, %v439
        %v456 = vadd.f32 %v403, %v440
        %v457 = vadd.f32 %v404, %v441
        %v458 = vadd.f32 %v405, %v442
        %v459 = vadd.f32 %v406, %v443
        %v460 = vadd.f32 %v407, %v444
        %v461 = vadd.f32 %v408, %v445
        %v462 = vadd.f32 %v409, %v446
        %v463 = vld [vmem:[%s410 + $0x1] sm:$0xff]
        %v464 = vld [vmem:[%s410 + $0x9] sm:$0xff]
        %v465 = vld [vmem:[%s410 + $0x19] sm:$0xff]
        %v466 = vld [vmem:[%s410 + $0x21] sm:$0xff]
        %v467 = vld [vmem:[%s410 + $0x31] sm:$0xff]
        %v468 = vld [vmem:[%s410 + $0x39] sm:$0xff]
        %v469 = vld [vmem:[%s410 + $0x49] sm:$0xff]
        %v470 = vld [vmem:[%s410 + $0x51] sm:$0xff]
        %v471 = vld [vmem:[%s410 + $0x61] sm:$0xff]
        %v472 = vld [vmem:[%s410 + $0x69] sm:$0xff]
        %v473 = vld [vmem:[%s410 + $0x79] sm:$0xff]
        %v474 = vld [vmem:[%s410 + $0x81] sm:$0xff]
        %v475 = vld [vmem:[%s410 + $0x91] sm:$0xff]
        %v476 = vld [vmem:[%s410 + $0x99] sm:$0xff]
        %v477 = vld [vmem:[%s410 + $0xa9] sm:$0xff]
        %v478 = vld [vmem:[%s410 + $0xb1] sm:$0xff]
        %v479 = vlaneseq
        %v480 = vshrl.u32 %v479, 7
        %v481 = vsub.s32 4, %v480
        %v482 = vrot.slane %v252, %v481
        %v483 = vmul.f32 %v463, %v482
        %v484 = vmul.f32 %v464, %v482
        %v485 = vmul.f32 %v465, %v482
        %v486 = vmul.f32 %v466, %v482
        %v487 = vmul.f32 %v467, %v482
        %v488 = vmul.f32 %v468, %v482
        %v489 = vmul.f32 %v469, %v482
        %v490 = vmul.f32 %v470, %v482
        %v491 = vmul.f32 %v471, %v482
        %v492 = vmul.f32 %v472, %v482
        %v493 = vmul.f32 %v473, %v482
        %v494 = vmul.f32 %v474, %v482
        %v495 = vmul.f32 %v475, %v482
        %v496 = vmul.f32 %v476, %v482
        %v497 = vmul.f32 %v477, %v482
        %v498 = vmul.f32 %v478, %v482
        %v499 = vadd.f32 %v447, %v483
        %v500 = vadd.f32 %v448, %v484
        %v501 = vadd.f32 %v449, %v485
        %v502 = vadd.f32 %v450, %v486
        %v503 = vadd.f32 %v451, %v487
        %v504 = vadd.f32 %v452, %v488
        %v505 = vadd.f32 %v453, %v489
        %v506 = vadd.f32 %v454, %v490
        %v507 = vadd.f32 %v455, %v491
        %v508 = vadd.f32 %v456, %v492
        %v509 = vadd.f32 %v457, %v493
        %v510 = vadd.f32 %v458, %v494
        %v511 = vadd.f32 %v459, %v495
        %v512 = vadd.f32 %v460, %v496
        %v513 = vadd.f32 %v461, %v497
        %v514 = vadd.f32 %v462, %v498
        %v515 = vld [vmem:[%s410 + $0x2] sm:$0xff]
        %v516 = vld [vmem:[%s410 + $0xa] sm:$0xff]
        %v517 = vld [vmem:[%s410 + $0x1a] sm:$0xff]
        %v518 = vld [vmem:[%s410 + $0x22] sm:$0xff]
        %v519 = vld [vmem:[%s410 + $0x32] sm:$0xff]
        %v520 = vld [vmem:[%s410 + $0x3a] sm:$0xff]
        %v521 = vld [vmem:[%s410 + $0x4a] sm:$0xff]
        %v522 = vld [vmem:[%s410 + $0x52] sm:$0xff]
        %v523 = vld [vmem:[%s410 + $0x62] sm:$0xff]
        %v524 = vld [vmem:[%s410 + $0x6a] sm:$0xff]
        %v525 = vld [vmem:[%s410 + $0x7a] sm:$0xff]
        %v526 = vld [vmem:[%s410 + $0x82] sm:$0xff]
        %v527 = vld [vmem:[%s410 + $0x92] sm:$0xff]
        %v528 = vld [vmem:[%s410 + $0x9a] sm:$0xff]
        %v529 = vld [vmem:[%s410 + $0xaa] sm:$0xff]
        %v530 = vld [vmem:[%s410 + $0xb2] sm:$0xff]
        %v531 = vlaneseq
        %v532 = vshrl.u32 %v531, 7
        %v533 = vsub.s32 5, %v532
        %v534 = vrot.slane %v252, %v533
        %v535 = vmul.f32 %v515, %v534
        %v536 = vmul.f32 %v516, %v534
        %v537 = vmul.f32 %v517, %v534
        %v538 = vmul.f32 %v518, %v534
        %v539 = vmul.f32 %v519, %v534
        %v540 = vmul.f32 %v520, %v534
        %v541 = vmul.f32 %v521, %v534
        %v542 = vmul.f32 %v522, %v534
        %v543 = vmul.f32 %v523, %v534
        %v544 = vmul.f32 %v524, %v534
        %v545 = vmul.f32 %v525, %v534
        %v546 = vmul.f32 %v526, %v534
        %v547 = vmul.f32 %v527, %v534
        %v548 = vmul.f32 %v528, %v534
        %v549 = vmul.f32 %v529, %v534
        %v550 = vmul.f32 %v530, %v534
        %v551 = vadd.f32 %v499, %v535
        %v552 = vadd.f32 %v500, %v536
        %v553 = vadd.f32 %v501, %v537
        %v554 = vadd.f32 %v502, %v538
        %v555 = vadd.f32 %v503, %v539
        %v556 = vadd.f32 %v504, %v540
        %v557 = vadd.f32 %v505, %v541
        %v558 = vadd.f32 %v506, %v542
        %v559 = vadd.f32 %v507, %v543
        %v560 = vadd.f32 %v508, %v544
        %v561 = vadd.f32 %v509, %v545
        %v562 = vadd.f32 %v510, %v546
        %v563 = vadd.f32 %v511, %v547
        %v564 = vadd.f32 %v512, %v548
        %v565 = vadd.f32 %v513, %v549
        %v566 = vadd.f32 %v514, %v550
        %s567 = scalar_lea.vmem %s250, 48
        %v568 = vld [vmem:[%s567] sm:$0xff]
        %v569 = vld [vmem:[%s567 + $0x8] sm:$0xff]
        %v570 = vld [vmem:[%s567 + $0x18] sm:$0xff]
        %v571 = vld [vmem:[%s567 + $0x20] sm:$0xff]
        %v572 = vld [vmem:[%s567 + $0x30] sm:$0xff]
        %v573 = vld [vmem:[%s567 + $0x38] sm:$0xff]
        %v574 = vld [vmem:[%s567 + $0x48] sm:$0xff]
        %v575 = vld [vmem:[%s567 + $0x50] sm:$0xff]
        %v576 = vld [vmem:[%s567 + $0x60] sm:$0xff]
        %v577 = vld [vmem:[%s567 + $0x68] sm:$0xff]
        %v578 = vld [vmem:[%s567 + $0x78] sm:$0xff]
        %v579 = vld [vmem:[%s567 + $0x80] sm:$0xff]
        %v580 = vld [vmem:[%s567 + $0x90] sm:$0xff]
        %v581 = vld [vmem:[%s567 + $0x98] sm:$0xff]
        %v582 = vld [vmem:[%s567 + $0xa8] sm:$0xff]
        %v583 = vld [vmem:[%s567 + $0xb0] sm:$0xff]
        %v584 = vlaneseq
        %v585 = vshrl.u32 %v584, 7
        %v586 = vsub.s32 6, %v585
        %v587 = vrot.slane %v252, %v586
        %v588 = vmul.f32 %v568, %v587
        %v589 = vmul.f32 %v569, %v587
        %v590 = vmul.f32 %v570, %v587
        %v591 = vmul.f32 %v571, %v587
        %v592 = vmul.f32 %v572, %v587
        %v593 = vmul.f32 %v573, %v587
        %v594 = vmul.f32 %v574, %v587
        %v595 = vmul.f32 %v575, %v587
        %v596 = vmul.f32 %v576, %v587
        %v597 = vmul.f32 %v577, %v587
        %v598 = vmul.f32 %v578, %v587
        %v599 = vmul.f32 %v579, %v587
        %v600 = vmul.f32 %v580, %v587
        %v601 = vmul.f32 %v581, %v587
        %v602 = vmul.f32 %v582, %v587
        %v603 = vmul.f32 %v583, %v587
        %v604 = vadd.f32 %v551, %v588
        %v605 = vadd.f32 %v552, %v589
        %v606 = vadd.f32 %v553, %v590
        %v607 = vadd.f32 %v554, %v591
        %v608 = vadd.f32 %v555, %v592
        %v609 = vadd.f32 %v556, %v593
        %v610 = vadd.f32 %v557, %v594
        %v611 = vadd.f32 %v558, %v595
        %v612 = vadd.f32 %v559, %v596
        %v613 = vadd.f32 %v560, %v597
        %v614 = vadd.f32 %v561, %v598
        %v615 = vadd.f32 %v562, %v599
        %v616 = vadd.f32 %v563, %v600
        %v617 = vadd.f32 %v564, %v601
        %v618 = vadd.f32 %v565, %v602
        %v619 = vadd.f32 %v566, %v603
        %v620 = vld [vmem:[%s567 + $0x1] sm:$0xff]
        %v621 = vld [vmem:[%s567 + $0x9] sm:$0xff]
        %v622 = vld [vmem:[%s567 + $0x19] sm:$0xff]
        %v623 = vld [vmem:[%s567 + $0x21] sm:$0xff]
        %v624 = vld [vmem:[%s567 + $0x31] sm:$0xff]
        %v625 = vld [vmem:[%s567 + $0x39] sm:$0xff]
        %v626 = vld [vmem:[%s567 + $0x49] sm:$0xff]
        %v627 = vld [vmem:[%s567 + $0x51] sm:$0xff]
        %v628 = vld [vmem:[%s567 + $0x61] sm:$0xff]
        %v629 = vld [vmem:[%s567 + $0x69] sm:$0xff]
        %v630 = vld [vmem:[%s567 + $0x79] sm:$0xff]
        %v631 = vld [vmem:[%s567 + $0x81] sm:$0xff]
        %v632 = vld [vmem:[%s567 + $0x91] sm:$0xff]
        %v633 = vld [vmem:[%s567 + $0x99] sm:$0xff]
        %v634 = vld [vmem:[%s567 + $0xa9] sm:$0xff]
        %v635 = vld [vmem:[%s567 + $0xb1] sm:$0xff]
        %v636 = vlaneseq
        %v637 = vshrl.u32 %v636, 7
        %v638 = vsub.s32 7, %v637
        %v639 = vrot.slane %v252, %v638
        %v640 = vmul.f32 %v620, %v639
        %v641 = vmul.f32 %v621, %v639
        %v642 = vmul.f32 %v622, %v639
        %v643 = vmul.f32 %v623, %v639
        %v644 = vmul.f32 %v624, %v639
        %v645 = vmul.f32 %v625, %v639
        %v646 = vmul.f32 %v626, %v639
        %v647 = vmul.f32 %v627, %v639
        %v648 = vmul.f32 %v628, %v639
        %v649 = vmul.f32 %v629, %v639
        %v650 = vmul.f32 %v630, %v639
        %v651 = vmul.f32 %v631, %v639
        %v652 = vmul.f32 %v632, %v639
        %v653 = vmul.f32 %v633, %v639
        %v654 = vmul.f32 %v634, %v639
        %v655 = vmul.f32 %v635, %v639
        %v656 = vadd.f32 %v604, %v640
        %v657 = vadd.f32 %v605, %v641
        %v658 = vadd.f32 %v606, %v642
        %v659 = vadd.f32 %v607, %v643
        %v660 = vadd.f32 %v608, %v644
        %v661 = vadd.f32 %v609, %v645
        %v662 = vadd.f32 %v610, %v646
        %v663 = vadd.f32 %v611, %v647
        %v664 = vadd.f32 %v612, %v648
        %v665 = vadd.f32 %v613, %v649
        %v666 = vadd.f32 %v614, %v650
        %v667 = vadd.f32 %v615, %v651
        %v668 = vadd.f32 %v616, %v652
        %v669 = vadd.f32 %v617, %v653
        %v670 = vadd.f32 %v618, %v654
        %v671 = vadd.f32 %v619, %v655
        %v672 = vld [vmem:[%s567 + $0x2] sm:$0xff]
        %v673 = vld [vmem:[%s567 + $0xa] sm:$0xff]
        %v674 = vld [vmem:[%s567 + $0x1a] sm:$0xff]
        %v675 = vld [vmem:[%s567 + $0x22] sm:$0xff]
        %v676 = vld [vmem:[%s567 + $0x32] sm:$0xff]
        %v677 = vld [vmem:[%s567 + $0x3a] sm:$0xff]
        %v678 = vld [vmem:[%s567 + $0x4a] sm:$0xff]
        %v679 = vld [vmem:[%s567 + $0x52] sm:$0xff]
        %v680 = vld [vmem:[%s567 + $0x62] sm:$0xff]
        %v681 = vld [vmem:[%s567 + $0x6a] sm:$0xff]
        %v682 = vld [vmem:[%s567 + $0x7a] sm:$0xff]
        %v683 = vld [vmem:[%s567 + $0x82] sm:$0xff]
        %v684 = vld [vmem:[%s567 + $0x92] sm:$0xff]
        %v685 = vld [vmem:[%s567 + $0x9a] sm:$0xff]
        %v686 = vld [vmem:[%s567 + $0xaa] sm:$0xff]
        %v687 = vld [vmem:[%s567 + $0xb2] sm:$0xff]
        %v688 = vlaneseq
        %v689 = vshrl.u32 %v688, 7
        %v690 = vsub.s32 0, %v689
        %v691 = vrot.slane %v253, %v690
        %v692 = vmul.f32 %v672, %v691
        %v693 = vmul.f32 %v673, %v691
        %v694 = vmul.f32 %v674, %v691
        %v695 = vmul.f32 %v675, %v691
        %v696 = vmul.f32 %v676, %v691
        %v697 = vmul.f32 %v677, %v691
        %v698 = vmul.f32 %v678, %v691
        %v699 = vmul.f32 %v679, %v691
        %v700 = vmul.f32 %v680, %v691
        %v701 = vmul.f32 %v681, %v691
        %v702 = vmul.f32 %v682, %v691
        %v703 = vmul.f32 %v683, %v691
        %v704 = vmul.f32 %v684, %v691
        %v705 = vmul.f32 %v685, %v691
        %v706 = vmul.f32 %v686, %v691
        %v707 = vmul.f32 %v687, %v691
        %v708 = vadd.f32 %v656, %v692
        %v709 = vadd.f32 %v657, %v693
        %v710 = vadd.f32 %v658, %v694
        %v711 = vadd.f32 %v659, %v695
        %v712 = vadd.f32 %v660, %v696
        %v713 = vadd.f32 %v661, %v697
        %v714 = vadd.f32 %v662, %v698
        %v715 = vadd.f32 %v663, %v699
        %v716 = vadd.f32 %v664, %v700
        %v717 = vadd.f32 %v665, %v701
        %v718 = vadd.f32 %v666, %v702
        %v719 = vadd.f32 %v667, %v703
        %v720 = vadd.f32 %v668, %v704
        %v721 = vadd.f32 %v669, %v705
        %v722 = vadd.f32 %v670, %v706
        %v723 = vadd.f32 %v671, %v707
        %v724 = vld [vmem:[%s2] sm:$0x1]
        %v726 = vlaneseq
        %v727 = vshrl.u32 %v726, 7
        %v728 = vsub.s32 0, %v727
        %v729 = vrot.slane %v724, %v728
        %v731 = vadd.f32 %v708, %v729
        %v732 = vadd.f32 %v709, %v729
        %v733 = vadd.f32 %v710, %v729
        %v734 = vadd.f32 %v711, %v729
        %v735 = vadd.f32 %v712, %v729
        %v736 = vadd.f32 %v713, %v729
        %v737 = vadd.f32 %v714, %v729
        %v738 = vadd.f32 %v715, %v729
        %v739 = vadd.f32 %v716, %v729
        %v740 = vadd.f32 %v717, %v729
        %v741 = vadd.f32 %v718, %v729
        %v742 = vadd.f32 %v719, %v729
        %v743 = vadd.f32 %v720, %v729
        %v744 = vadd.f32 %v721, %v729
        %v745 = vadd.f32 %v722, %v729
        %v746 = vadd.f32 %v723, %v729
        %v747 = vmul.f32 %v731, 0.5
        %v748 = vmul.f32 %v732, 0.5
        %v749 = vmul.f32 %v733, 0.5
        %v750 = vmul.f32 %v734, 0.5
        %v751 = vmul.f32 %v735, 0.5
        %v752 = vmul.f32 %v736, 0.5
        %v753 = vmul.f32 %v737, 0.5
        %v754 = vmul.f32 %v738, 0.5
        %v755 = vmul.f32 %v739, 0.5
        %v756 = vmul.f32 %v740, 0.5
        %v757 = vmul.f32 %v741, 0.5
        %v758 = vmul.f32 %v742, 0.5
        %v759 = vmul.f32 %v743, 0.5
        %v760 = vmul.f32 %v744, 0.5
        %v761 = vmul.f32 %v745, 0.5
        %v762 = vmul.f32 %v746, 0.5
        %v763 = vtanh.pop %v747
        %v764 = vtanh.pop %v748
        %v765 = vtanh.pop %v749
        %v766 = vtanh.pop %v750
        %v767 = vtanh.pop %v751
        %v768 = vtanh.pop %v752
        %v769 = vtanh.pop %v753
        %v770 = vtanh.pop %v754
        %v771 = vtanh.pop %v755
        %v772 = vtanh.pop %v756
        %v773 = vtanh.pop %v757
        %v774 = vtanh.pop %v758
        %v775 = vtanh.pop %v759
        %v776 = vtanh.pop %v760
        %v777 = vtanh.pop %v761
        %v778 = vtanh.pop %v762
        %v779 = vmul.f32 %v763, 0.5
        %v780 = vmul.f32 %v764, 0.5
        %v781 = vmul.f32 %v765, 0.5
        %v782 = vmul.f32 %v766, 0.5
        %v783 = vmul.f32 %v767, 0.5
        %v784 = vmul.f32 %v768, 0.5
        %v785 = vmul.f32 %v769, 0.5
        %v786 = vmul.f32 %v770, 0.5
        %v787 = vmul.f32 %v771, 0.5
        %v788 = vmul.f32 %v772, 0.5
        %v789 = vmul.f32 %v773, 0.5
        %v790 = vmul.f32 %v774, 0.5
        %v791 = vmul.f32 %v775, 0.5
        %v792 = vmul.f32 %v776, 0.5
        %v793 = vmul.f32 %v777, 0.5
        %v794 = vmul.f32 %v778, 0.5
        %v795 = vadd.f32 %v779, 0.5
        %v796 = vadd.f32 %v780, 0.5
        %v797 = vadd.f32 %v781, 0.5
        %v798 = vadd.f32 %v782, 0.5
        %v799 = vadd.f32 %v783, 0.5
        %v800 = vadd.f32 %v784, 0.5
        %v801 = vadd.f32 %v785, 0.5
        %v802 = vadd.f32 %v786, 0.5
        %v803 = vadd.f32 %v787, 0.5
        %v804 = vadd.f32 %v788, 0.5
        %v805 = vadd.f32 %v789, 0.5
        %v806 = vadd.f32 %v790, 0.5
        %v807 = vadd.f32 %v791, 0.5
        %v808 = vadd.f32 %v792, 0.5
        %v809 = vadd.f32 %v793, 0.5
        %v810 = vadd.f32 %v794, 0.5
        %v811 = vmul.f32 %v731, %v795
        %v812 = vmul.f32 %v732, %v796
        %v813 = vmul.f32 %v733, %v797
        %v814 = vmul.f32 %v734, %v798
        %v815 = vmul.f32 %v735, %v799
        %v816 = vmul.f32 %v736, %v800
        %v817 = vmul.f32 %v737, %v801
        %v818 = vmul.f32 %v738, %v802
        %v819 = vmul.f32 %v739, %v803
        %v820 = vmul.f32 %v740, %v804
        %v821 = vmul.f32 %v741, %v805
        %v822 = vmul.f32 %v742, %v806
        %v823 = vmul.f32 %v743, %v807
        %v824 = vmul.f32 %v744, %v808
        %v825 = vmul.f32 %v745, %v809
        %v826 = vmul.f32 %v746, %v810
        %v827 = vld [vmem:[%s3] sm:$0xff]
        %v828 = vld [vmem:[%s3 + $0x8] sm:$0xff]
        %v829 = vld [vmem:[%s3 + $0x10] sm:$0xff]
        %v830 = vld [vmem:[%s3 + $0x18] sm:$0xff]
        %v831 = vld [vmem:[%s3 + $0x20] sm:$0xff]
        %v832 = vld [vmem:[%s3 + $0x28] sm:$0xff]
        %v833 = vld [vmem:[%s3 + $0x30] sm:$0xff]
        %v834 = vld [vmem:[%s3 + $0x38] sm:$0xff]
        %v835 = vld [vmem:[%s3 + $0x40] sm:$0xff]
        %v836 = vld [vmem:[%s3 + $0x48] sm:$0xff]
        %v837 = vld [vmem:[%s3 + $0x50] sm:$0xff]
        %v838 = vld [vmem:[%s3 + $0x58] sm:$0xff]
        %v839 = vld [vmem:[%s3 + $0x60] sm:$0xff]
        %v840 = vld [vmem:[%s3 + $0x68] sm:$0xff]
        %v841 = vld [vmem:[%s3 + $0x70] sm:$0xff]
        %v842 = vld [vmem:[%s3 + $0x78] sm:$0xff]
        %v843 = vld [vmem:[%s4] sm:$0x1]
        %v845 = vlaneseq
        %v846 = vshrl.u32 %v845, 7
        %v847 = vsub.s32 0, %v846
        %v848 = vrot.slane %v843, %v847
        %850 = vmatprep.subr.mxu0 0.0
        %851 = vmatpush1.msra.mxu0 %v827
        %852 = vmatprep.subr.mxu0 0.0
        %853 = vmatpush1.msra.mxu0 %v828
        %854 = vmatprep.subr.mxu0 0.0
        %855 = vmatpush1.msra.mxu0 %v829
        %856 = vmatprep.subr.mxu0 0.0
        %857 = vmatpush1.msra.mxu0 %v830
        %858 = vmatprep.subr.mxu0 0.0
        %859 = vmatpush1.msra.mxu0 %v831
        %860 = vmatprep.subr.mxu0 0.0
        %861 = vmatpush1.msra.mxu0 %v832
        %862 = vmatprep.subr.mxu0 0.0
        %863 = vmatpush1.msra.mxu0 %v833
        %864 = vmatprep.subr.mxu0 0.0
        %865 = vmatpush1.msra.mxu0 %v834
        %866 = vmatprep.subr.mxu0 0.0
        %867 = vmatpush1.msra.mxu0 %v835
        %868 = vmatprep.subr.mxu0 0.0
        %869 = vmatpush1.msra.mxu0 %v836
        %870 = vmatprep.subr.mxu0 0.0
        %871 = vmatpush1.msra.mxu0 %v837
        %872 = vmatprep.subr.mxu0 0.0
        %873 = vmatpush1.msra.mxu0 %v838
        %874 = vmatprep.subr.mxu0 0.0
        %875 = vmatpush1.msra.mxu0 %v839
        %876 = vmatprep.subr.mxu0 0.0
        %877 = vmatpush1.msra.mxu0 %v840
        %878 = vmatprep.subr.mxu0 0.0
        %879 = vmatpush1.msra.mxu0 %v841
        %880 = vmatprep.subr.mxu0 0.0
        %881 = vmatpush1.msra.mxu0 %v842
        %882 = vmatprep.subr.mxu0 0.0
        %883 = vmatpush1.msra.mxu0 0.0
        %884 = vmatprep.subr.mxu0 0.0
        %885 = vmatpush1.msra.mxu0 0.0
        %886 = vmatprep.subr.mxu0 0.0
        %887 = vmatpush1.msra.mxu0 0.0
        %888 = vmatprep.subr.mxu0 0.0
        %889 = vmatpush1.msra.mxu0 0.0
        %890 = vmatprep.subr.mxu0 0.0
        %891 = vmatpush1.msra.mxu0 0.0
        %892 = vmatprep.subr.mxu0 0.0
        %893 = vmatpush1.msra.mxu0 0.0
        %894 = vmatprep.subr.mxu0 0.0
        %895 = vmatpush1.msra.mxu0 0.0
        %896 = vmatprep.subr.mxu0 0.0
        %897 = vmatpush1.msra.mxu0 0.0
        %898 = vmatprep.subr.mxu0 0.0
        %899 = vmatpush1.msra.mxu0 0.0
        %900 = vmatprep.subr.mxu0 0.0
        %901 = vmatpush1.msra.mxu0 0.0
        %902 = vmatprep.subr.mxu0 0.0
        %903 = vmatpush1.msra.mxu0 0.0
        %904 = vmatprep.subr.mxu0 0.0
        %905 = vmatpush1.msra.mxu0 0.0
        %906 = vmatprep.subr.mxu0 0.0
        %907 = vmatpush1.msra.mxu0 0.0
        %908 = vmatprep.subr.mxu0 0.0
        %909 = vmatpush1.msra.mxu0 0.0
        %910 = vmatprep.subr.mxu0 0.0
        %911 = vmatpush1.msra.mxu0 0.0
        %912 = vmatprep.subr.mxu0 0.0
        %913 = vmatpush1.msra.mxu0 0.0
        %914 = vmatprep.mubr.f32.mxu0 0.0
        %915 = vmatmul.mubr.f32.gmra.mrb[0].mxu0 %v811
        %v916 = vpop.f32.mrb[0].mxu0
        %v917 = vadd.f32 %v848, %v916
        %v918 = vpop.f32.mrb[0].mxu0
        %919 = vmatprep.mubr.f32.mxu0 0.0
        %920 = vmatmul.mubr.f32.gmra.mrb[0].mxu0 %v812
        %v921 = vpop.f32.mrb[0].mxu0
        %v922 = vadd.f32 %v848, %v921
        %v923 = vpop.f32.mrb[0].mxu0
        %924 = vmatprep.mubr.f32.mxu0 0.0
        %925 = vmatmul.mubr.f32.gmra.mrb[0].mxu0 %v813
        %v926 = vpop.f32.mrb[0].mxu0
        %v927 = vadd.f32 %v848, %v926
        %v928 = vpop.f32.mrb[0].mxu0
        %929 = vmatprep.mubr.f32.mxu0 0.0
        %930 = vmatmul.mubr.f32.gmra.mrb[0].mxu0 %v814
        %v931 = vpop.f32.mrb[0].mxu0
        %v932 = vadd.f32 %v848, %v931
        %v933 = vpop.f32.mrb[0].mxu0
        %934 = vmatprep.mubr.f32.mxu0 0.0
        %935 = vmatmul.mubr.f32.gmra.mrb[0].mxu0 %v815
        %v936 = vpop.f32.mrb[0].mxu0
        %v937 = vadd.f32 %v848, %v936
        %v938 = vpop.f32.mrb[0].mxu0
        %939 = vmatprep.mubr.f32.mxu0 0.0
        %940 = vmatmul.mubr.f32.gmra.mrb[0].mxu0 %v816
        %v941 = vpop.f32.mrb[0].mxu0
        %v942 = vadd.f32 %v848, %v941
        %v943 = vpop.f32.mrb[0].mxu0
        %944 = vmatprep.mubr.f32.mxu0 0.0
        %945 = vmatmul.mubr.f32.gmra.mrb[0].mxu0 %v817
        %v946 = vpop.f32.mrb[0].mxu0
        %v947 = vadd.f32 %v848, %v946
        %v948 = vpop.f32.mrb[0].mxu0
        %949 = vmatprep.mubr.f32.mxu0 0.0
        %950 = vmatmul.mubr.f32.gmra.mrb[0].mxu0 %v818
        %v951 = vpop.f32.mrb[0].mxu0
        %v952 = vadd.f32 %v848, %v951
        %v953 = vpop.f32.mrb[0].mxu0
        %954 = vmatprep.mubr.f32.mxu0 0.0
        %955 = vmatmul.mubr.f32.gmra.mrb[0].mxu0 %v819
        %v956 = vpop.f32.mrb[0].mxu0
        %v957 = vadd.f32 %v848, %v956
        %v958 = vpop.f32.mrb[0].mxu0
        %959 = vmatprep.mubr.f32.mxu0 0.0
        %960 = vmatmul.mubr.f32.gmra.mrb[0].mxu0 %v820
        %v961 = vpop.f32.mrb[0].mxu0
        %v962 = vadd.f32 %v848, %v961
        %v963 = vpop.f32.mrb[0].mxu0
        %964 = vmatprep.mubr.f32.mxu0 0.0
        %965 = vmatmul.mubr.f32.gmra.mrb[0].mxu0 %v821
        %v966 = vpop.f32.mrb[0].mxu0
        %v967 = vadd.f32 %v848, %v966
        %v968 = vpop.f32.mrb[0].mxu0
        %969 = vmatprep.mubr.f32.mxu0 0.0
        %970 = vmatmul.mubr.f32.gmra.mrb[0].mxu0 %v822
        %v971 = vpop.f32.mrb[0].mxu0
        %v972 = vadd.f32 %v848, %v971
        %v973 = vpop.f32.mrb[0].mxu0
        %974 = vmatprep.mubr.f32.mxu0 0.0
        %975 = vmatmul.mubr.f32.gmra.mrb[0].mxu0 %v823
        %v976 = vpop.f32.mrb[0].mxu0
        %v977 = vadd.f32 %v848, %v976
        %v978 = vpop.f32.mrb[0].mxu0
        %979 = vmatprep.mubr.f32.mxu0 0.0
        %980 = vmatmul.mubr.f32.gmra.mrb[0].mxu0 %v824
        %v981 = vpop.f32.mrb[0].mxu0
        %v982 = vadd.f32 %v848, %v981
        %v983 = vpop.f32.mrb[0].mxu0
        %984 = vmatprep.mubr.f32.mxu0 0.0
        %985 = vmatmul.mubr.f32.gmra.mrb[0].mxu0 %v825
        %v986 = vpop.f32.mrb[0].mxu0
        %v987 = vadd.f32 %v848, %v986
        %v988 = vpop.f32.mrb[0].mxu0
        %989 = vmatprep.mubr.f32.mxu0 0.0
        %990 = vmatmul.mubr.f32.gmra.mrb[0].mxu0 %v826
        %v991 = vpop.f32.mrb[0].mxu0
        %v992 = vadd.f32 %v848, %v991
        %v993 = vpop.f32.mrb[0].mxu0
        %994 = vdwg.mxu0
        %v995 = vmul.f32 %v917, 0.5
        %v996 = vmul.f32 %v922, 0.5
        %v997 = vmul.f32 %v927, 0.5
        %v998 = vmul.f32 %v932, 0.5
        %v999 = vmul.f32 %v937, 0.5
        %v1000 = vmul.f32 %v942, 0.5
        %v1001 = vmul.f32 %v947, 0.5
        %v1002 = vmul.f32 %v952, 0.5
        %v1003 = vmul.f32 %v957, 0.5
        %v1004 = vmul.f32 %v962, 0.5
        %v1005 = vmul.f32 %v967, 0.5
        %v1006 = vmul.f32 %v972, 0.5
        %v1007 = vmul.f32 %v977, 0.5
        %v1008 = vmul.f32 %v982, 0.5
        %v1009 = vmul.f32 %v987, 0.5
        %v1010 = vmul.f32 %v992, 0.5
        %v1011 = vtanh.pop %v995
        %v1012 = vtanh.pop %v996
        %v1013 = vtanh.pop %v997
        %v1014 = vtanh.pop %v998
        %v1015 = vtanh.pop %v999
        %v1016 = vtanh.pop %v1000
        %v1017 = vtanh.pop %v1001
        %v1018 = vtanh.pop %v1002
        %v1019 = vtanh.pop %v1003
        %v1020 = vtanh.pop %v1004
        %v1021 = vtanh.pop %v1005
        %v1022 = vtanh.pop %v1006
        %v1023 = vtanh.pop %v1007
        %v1024 = vtanh.pop %v1008
        %v1025 = vtanh.pop %v1009
        %v1026 = vtanh.pop %v1010
        %v1027 = vmul.f32 %v1011, 0.5
        %v1028 = vmul.f32 %v1012, 0.5
        %v1029 = vmul.f32 %v1013, 0.5
        %v1030 = vmul.f32 %v1014, 0.5
        %v1031 = vmul.f32 %v1015, 0.5
        %v1032 = vmul.f32 %v1016, 0.5
        %v1033 = vmul.f32 %v1017, 0.5
        %v1034 = vmul.f32 %v1018, 0.5
        %v1035 = vmul.f32 %v1019, 0.5
        %v1036 = vmul.f32 %v1020, 0.5
        %v1037 = vmul.f32 %v1021, 0.5
        %v1038 = vmul.f32 %v1022, 0.5
        %v1039 = vmul.f32 %v1023, 0.5
        %v1040 = vmul.f32 %v1024, 0.5
        %v1041 = vmul.f32 %v1025, 0.5
        %v1042 = vmul.f32 %v1026, 0.5
        %v1043 = vadd.f32 %v1027, 0.5
        %v1044 = vadd.f32 %v1028, 0.5
        %v1045 = vadd.f32 %v1029, 0.5
        %v1046 = vadd.f32 %v1030, 0.5
        %v1047 = vadd.f32 %v1031, 0.5
        %v1048 = vadd.f32 %v1032, 0.5
        %v1049 = vadd.f32 %v1033, 0.5
        %v1050 = vadd.f32 %v1034, 0.5
        %v1051 = vadd.f32 %v1035, 0.5
        %v1052 = vadd.f32 %v1036, 0.5
        %v1053 = vadd.f32 %v1037, 0.5
        %v1054 = vadd.f32 %v1038, 0.5
        %v1055 = vadd.f32 %v1039, 0.5
        %v1056 = vadd.f32 %v1040, 0.5
        %v1057 = vadd.f32 %v1041, 0.5
        %v1058 = vadd.f32 %v1042, 0.5
        %v1059 = vmul.f32 %v917, %v1043
        %v1060 = vmul.f32 %v922, %v1044
        %v1061 = vmul.f32 %v927, %v1045
        %v1062 = vmul.f32 %v932, %v1046
        %v1063 = vmul.f32 %v937, %v1047
        %v1064 = vmul.f32 %v942, %v1048
        %v1065 = vmul.f32 %v947, %v1049
        %v1066 = vmul.f32 %v952, %v1050
        %v1067 = vmul.f32 %v957, %v1051
        %v1068 = vmul.f32 %v962, %v1052
        %v1069 = vmul.f32 %v967, %v1053
        %v1070 = vmul.f32 %v972, %v1054
        %v1071 = vmul.f32 %v977, %v1055
        %v1072 = vmul.f32 %v982, %v1056
        %v1073 = vmul.f32 %v987, %v1057
        %v1074 = vmul.f32 %v992, %v1058
        %1075 = vst [vmem:[%s241] sm:$0xff] %v1059
        %1076 = vst [vmem:[%s241 + $0x8] sm:$0xff] %v1060
        %1077 = vst [vmem:[%s241 + $0x10] sm:$0xff] %v1061
        %1078 = vst [vmem:[%s241 + $0x18] sm:$0xff] %v1062
        %1079 = vst [vmem:[%s241 + $0x20] sm:$0xff] %v1063
        %1080 = vst [vmem:[%s241 + $0x28] sm:$0xff] %v1064
        %1081 = vst [vmem:[%s241 + $0x30] sm:$0xff] %v1065
        %1082 = vst [vmem:[%s241 + $0x38] sm:$0xff] %v1066
        %1083 = vst [vmem:[%s241 + $0x40] sm:$0xff] %v1067
        %1084 = vst [vmem:[%s241 + $0x48] sm:$0xff] %v1068
        %1085 = vst [vmem:[%s241 + $0x50] sm:$0xff] %v1069
        %1086 = vst [vmem:[%s241 + $0x58] sm:$0xff] %v1070
        %1087 = vst [vmem:[%s241 + $0x60] sm:$0xff] %v1071
        %1088 = vst [vmem:[%s241 + $0x68] sm:$0xff] %v1072
        %1089 = vst [vmem:[%s241 + $0x70] sm:$0xff] %v1073
        %1090 = vst [vmem:[%s241 + $0x78] sm:$0xff] %v1074
        %s1091 = sand.u32 %s153, 1
        %s1092 = scalar_lea.sflag [#allocation3], %s1091
        %s1093 = sand.u32 %s153, 1
        %s1094 = smul.addr %s1093, 128
        %s1095 = scalar_lea.vmem [#allocation2], %s1094
        // Predicated region
        $region41: #{tpu_custom_call.1} parent=39 // pred_check
          %p1096 = pneg %p163
        $region42: #{tpu_custom_call.1} parent=39 // pred_check_branch
          %1098 = sbr.rel (%p1096) target = $region44
        $region43: #{tpu_custom_call.1} parent=39 // pred_region
          %s1099 = smul.u32 8, %s24
          %s1101 = ssub.s32 2048, 2048
          %1102 = vsyncadd %s1092, %s1101
          %s1103 = smul.addr %s1099, 2
          %s1104 = smul.addr %s23, 32
          %s1105 = sadd.s32 %s1103, %s1104
          %s1106 = smul.addr %s1105, 128
          %s1107 = scalar_lea.hbm %s5, %s1106
          %s1108 = sshll.u32 %s1095, 4
          %s1109 = int_to_ptr.vmem [resolvable:$true] %s1108
          %1114 = dma.vmem_to_hbm [thread:$0]  %s1109, 2048, %s1107, %s1092, 128, 128, 8
        $region44: #{tpu_custom_call.1} parent=39 // pred_fallthru
          _
      $region40: #{tpu_custom_call.1} parent=5 // pred_fallthru
        _
      %p1115 = scmp.le.s32.totalorder 2, %s14
      // Predicated region
      $region45: #{tpu_custom_call.1} parent=5 // pred_check
        %p1116 = pneg %p1115
      $region46: #{tpu_custom_call.1} parent=5 // pred_check_branch
        %1118 = sbr.rel (%p1116) target = $region48
      $region47: #{tpu_custom_call.1} parent=5 // pred_region
        %s1119 = ssub.s32 %s14, 2
        // Predicated region
        $region49: #{tpu_custom_call.1} parent=47 // pred_check
          %p1120 = pneg %p169
        $region50: #{tpu_custom_call.1} parent=47 // pred_check_branch
          %1122 = sbr.rel (%p1120) target = $region52
        $region51: #{tpu_custom_call.1} parent=47 // pred_region
          %s1123 = sand.u32 %s154, 1
          %s1124 = scalar_lea.sflag [#allocation3], %s1123
          %s1125 = sand.u32 %s154, 1
          %s1126 = smul.addr %s1125, 128
          %s1127 = scalar_lea.vmem [#allocation2], %s1126
          %1128 = dma.done %s1124, 2048
        $region52: #{tpu_custom_call.1} parent=47 // pred_fallthru
          _
      $region48: #{tpu_custom_call.1} parent=5 // pred_fallthru
        _
    $region6: #{tpu_custom_call.1} parent=1 // loop_footer
      %s18 = sadd.s32 1, %s14
    $region7: #{tpu_custom_call.1} parent=1 // loop_footer_branch
      %13 = sbr.rel target = $region3
    $region8: #{tpu_custom_call.1} parent=1 // loop_exit
      _
    %1129 = vsyncpa [#allocation3], 1
    %s1130 = scalar_lea.sflag [#allocation3], 1
    %1131 = vsyncpa %s1130, 1

// kernel: tpu_custom_call.1
$region0: #{tpu_custom_call.1}
  #allocation0 [shape = 'u32[]', space=smem, size = 0x4, offset = 0x4, fixed_abs, tag = 'smem constant byte address 0x4 - core index']
  #allocation1 [shape = 'u32[144,128]{1,0:T(1,128)}', space=vmem, size = 0x12000, scoped, tag = 'internal scratch']
  %s0 = inlined_call_operand.vmem [shape: f32[2,2,10,18,128], index: 0, kind: input, shape index: {}]
  %s1 = inlined_call_operand.vmem [shape: f32[9,128], index: 1, kind: input, shape index: {}]
  %s2 = inlined_call_operand.vmem [shape: f32[1,128], index: 2, kind: input, shape index: {}]
  %s3 = inlined_call_operand.vmem [shape: f32[128,128], index: 3, kind: input, shape index: {}]
  %s4 = inlined_call_operand.vmem [shape: f32[1,128], index: 4, kind: input, shape index: {}]
  %s5 = inlined_call_operand.hbm [shape: f32[2,16,16,128], index: 5, kind: output, shape index: {}]
  %s6 = sld [smem:[#allocation0]]
  $region53: #{tpu_custom_call.1} parent=0
    _
  %s8 = ssub.s32 1, %s6
  %s9 = scalar_select 0, %s8, %s6
  $region1: #{tpu_custom_call.1} parent=0
    #allocation2 [shape = 'u8[131072]{0}', space=vmem, size = 0x20000, scoped, tag = 'output window, operand 0']
    #allocation3 [shape = 's32[2]{0}', space=sflag, size = 0x8, scoped, tag = 'scoped memory for tpu_custom_call.1']
    %10 = vsyncpa [#allocation3], 0
    %s11 = scalar_lea.sflag [#allocation3], 1
    %12 = vsyncpa %s11, 0
    loop: start=0, step=1, limit=6
    $region2: #{tpu_custom_call.1} parent=1 // loop_pre_header
      _
    $region3: #{tpu_custom_call.1} parent=1 // loop_header
      %s14 = sphi 0, %s18
      %p15 = scmp.ge.s32.totalorder %s14, 6
      %s21 = sphi 0, %s33
      %s22 = sphi 0, %s29
      %s23 = sphi 0, %s21
      %s24 = sphi 0, %s22
      %s25 = sphi 0, %s23
      %s26 = sphi 0, %s24
      %s38 = sphi 0, %s40
      %s41 = sphi 0, %s38
      %s42 = sphi 0, %s41
      %s58 = sphi 0, %s42
      %s62 = sphi 0, %s62
      %s64 = sphi 0, %s62
      %s65 = sphi 0, %s64
      %s79 = sphi 0, %s65
      %s83 = sphi 0, %s83
      %s85 = sphi 0, %s83
      %s86 = sphi 0, %s85
      %s100 = sphi 0, %s86
      %s104 = sphi 0, %s104
      %s106 = sphi 0, %s104
      %s107 = sphi 0, %s106
      %s121 = sphi 0, %s107
      %s125 = sphi 0, %s125
      %s127 = sphi 0, %s125
      %s128 = sphi 0, %s127
      %s142 = sphi 0, %s128
      %s150 = sphi 0, %s152
      %s153 = sphi 0, %s150
      %s154 = sphi 0, %s153
      %s170 = sphi 0, %s154
    $region4: #{tpu_custom_call.1} parent=1 // loop_header_branch
      %17 = sbr.rel (%p15) target = $region8
    $region5: #{tpu_custom_call.1} parent=1 // loop_body
      %s19 = ssub.s32 %s14, 1
      %s20 = ssub.s32 %s14, 2
      %s27 = sadd.s32 1, %s22
      %p28 = scmp.ge.s32.totalorder %s27, 2
      %s29 = scalar_select %p28, 0, %s27
      %s30 = sadd.s32 1, %s21
      %s31 = scalar_select %p28, %s30, %s21
      %p32 = scmp.ge.s32.totalorder %s31, 2
      %s33 = scalar_select %p32, 0, %s31
      %s34 = ssub.s32 %s21, %s33
      %s35 = ssub.s32 %s22, %s29
      %s36 = sor.u32 %s34, %s35
      %p37 = scmp.eq.s32.totalorder %s36, 0
      %s39 = sadd.s32 %s38, 1
      %s40 = scalar_select %p37, %s38, %s39
      %p43 = pneg %p37
      %p44 = scmp.eq.s32.totalorder %s14, 3
      %p45 = por %p43, %p44
      %p46 = scmp.ne.s32.totalorder %s38, %s41
      %p47 = scmp.eq.s32.totalorder %s14, 0
      %p48 = por %p46, %p47
      %p49 = scmp.ne.s32.totalorder %s38, %s41
      %p50 = scmp.eq.s32.totalorder %s19, 3
      %p51 = por %p49, %p50
      %p52 = scmp.ne.s32.totalorder %s41, %s42
      %p53 = scmp.eq.s32.totalorder %s19, 0
      %p54 = por %p52, %p53
      %p55 = scmp.ne.s32.totalorder %s41, %s42
      %p56 = scmp.eq.s32.totalorder %s20, 3
      %p57 = por %p55, %p56
      %p59 = scmp.ne.s32.totalorder %s42, %s58
      %p60 = scmp.eq.s32.totalorder %s20, 0
      %p61 = por %p59, %p60
      %s63 = sadd.s32 %s62, 1
      %p66 = scmp.eq.s32.totalorder %s14, 3
      %p67 = scmp.ne.s32.totalorder %s62, %s64
      %p68 = scmp.eq.s32.totalorder %s14, 0
      %p69 = por %p67, %p68
      %p70 = scmp.ne.s32.totalorder %s62, %s64
      %p71 = scmp.eq.s32.totalorder %s19, 3
      %p72 = por %p70, %p71
      %p73 = scmp.ne.s32.totalorder %s64, %s65
      %p74 = scmp.eq.s32.totalorder %s19, 0
      %p75 = por %p73, %p74
      %p76 = scmp.ne.s32.totalorder %s64, %s65
      %p77 = scmp.eq.s32.totalorder %s20, 3
      %p78 = por %p76, %p77
      %p80 = scmp.ne.s32.totalorder %s65, %s79
      %p81 = scmp.eq.s32.totalorder %s20, 0
      %p82 = por %p80, %p81
      %s84 = sadd.s32 %s83, 1
      %p87 = scmp.eq.s32.totalorder %s14, 3
      %p88 = scmp.ne.s32.totalorder %s83, %s85
      %p89 = scmp.eq.s32.totalorder %s14, 0
      %p90 = por %p88, %p89
      %p91 = scmp.ne.s32.totalorder %s83, %s85
      %p92 = scmp.eq.s32.totalorder %s19, 3
      %p93 = por %p91, %p92
      %p94 = scmp.ne.s32.totalorder %s85, %s86
      %p95 = scmp.eq.s32.totalorder %s19, 0
      %p96 = por %p94, %p95
      %p97 = scmp.ne.s32.totalorder %s85, %s86
      %p98 = scmp.eq.s32.totalorder %s20, 3
      %p99 = por %p97, %p98
      %p101 = scmp.ne.s32.totalorder %s86, %s100
      %p102 = scmp.eq.s32.totalorder %s20, 0
      %p103 = por %p101, %p102
      %s105 = sadd.s32 %s104, 1
      %p108 = scmp.eq.s32.totalorder %s14, 3
      %p109 = scmp.ne.s32.totalorder %s104, %s106
      %p110 = scmp.eq.s32.totalorder %s14, 0
      %p111 = por %p109, %p110
      %p112 = scmp.ne.s32.totalorder %s104, %s106
      %p113 = scmp.eq.s32.totalorder %s19, 3
      %p114 = por %p112, %p113
      %p115 = scmp.ne.s32.totalorder %s106, %s107
      %p116 = scmp.eq.s32.totalorder %s19, 0
      %p117 = por %p115, %p116
      %p118 = scmp.ne.s32.totalorder %s106, %s107
      %p119 = scmp.eq.s32.totalorder %s20, 3
      %p120 = por %p118, %p119
      %p122 = scmp.ne.s32.totalorder %s107, %s121
      %p123 = scmp.eq.s32.totalorder %s20, 0
      %p124 = por %p122, %p123
      %s126 = sadd.s32 %s125, 1
      %p129 = scmp.eq.s32.totalorder %s14, 3
      %p130 = scmp.ne.s32.totalorder %s125, %s127
      %p131 = scmp.eq.s32.totalorder %s14, 0
      %p132 = por %p130, %p131
      %p133 = scmp.ne.s32.totalorder %s125, %s127
      %p134 = scmp.eq.s32.totalorder %s19, 3
      %p135 = por %p133, %p134
      %p136 = scmp.ne.s32.totalorder %s127, %s128
      %p137 = scmp.eq.s32.totalorder %s19, 0
      %p138 = por %p136, %p137
      %p139 = scmp.ne.s32.totalorder %s127, %s128
      %p140 = scmp.eq.s32.totalorder %s20, 3
      %p141 = por %p139, %p140
      %p143 = scmp.ne.s32.totalorder %s128, %s142
      %p144 = scmp.eq.s32.totalorder %s20, 0
      %p145 = por %p143, %p144
      %s146 = ssub.s32 %s21, %s33
      %s147 = ssub.s32 %s22, %s29
      %s148 = sor.u32 %s146, %s147
      %p149 = scmp.eq.s32.totalorder %s148, 0
      %s151 = sadd.s32 %s150, 1
      %s152 = scalar_select %p149, %s150, %s151
      %p155 = pneg %p149
      %p156 = scmp.eq.s32.totalorder %s14, 3
      %p157 = por %p155, %p156
      %p158 = scmp.ne.s32.totalorder %s150, %s153
      %p159 = scmp.eq.s32.totalorder %s14, 0
      %p160 = por %p158, %p159
      %p161 = scmp.ne.s32.totalorder %s150, %s153
      %p162 = scmp.eq.s32.totalorder %s19, 3
      %p163 = por %p161, %p162
      %p164 = scmp.ne.s32.totalorder %s153, %s154
      %p165 = scmp.eq.s32.totalorder %s19, 0
      %p166 = por %p164, %p165
      %p167 = scmp.ne.s32.totalorder %s153, %s154
      %p168 = scmp.eq.s32.totalorder %s20, 3
      %p169 = por %p167, %p168
      %p171 = scmp.ne.s32.totalorder %s154, %s170
      %p172 = scmp.eq.s32.totalorder %s20, 0
      %p173 = por %p171, %p172
      %p174 = scmp.le.s32.totalorder 1, %s14
      %p175 = scmp.lt.s32.totalorder %s14, 5
      %p176 = pnand %p174, %p175
      %p177 = pneg %p176
      // Predicated region
      $region9: #{tpu_custom_call.1} parent=5 // pred_check
        _
      $region10: #{tpu_custom_call.1} parent=5 // pred_check_branch
        %179 = sbr.rel (%p176) target = $region12
      $region11: #{tpu_custom_call.1} parent=5 // pred_region
        %s180 = ssub.s32 %s14, 1
        // Predicated region
        $region13: #{tpu_custom_call.1} parent=11 // pred_check
          %p181 = pneg %p75
        $region14: #{tpu_custom_call.1} parent=11 // pred_check_branch
          %183 = sbr.rel (%p181) target = $region16
        $region15: #{tpu_custom_call.1} parent=11 // pred_region
          _
        $region16: #{tpu_custom_call.1} parent=11 // pred_fallthru
          _
        // Predicated region
        $region17: #{tpu_custom_call.1} parent=11 // pred_check
          %p184 = pneg %p96
        $region18: #{tpu_custom_call.1} parent=11 // pred_check_branch
          %186 = sbr.rel (%p184) target = $region20
        $region19: #{tpu_custom_call.1} parent=11 // pred_region
          _
        $region20: #{tpu_custom_call.1} parent=11 // pred_fallthru
          _
        // Predicated region
        $region21: #{tpu_custom_call.1} parent=11 // pred_check
          %p187 = pneg %p117
        $region22: #{tpu_custom_call.1} parent=11 // pred_check_branch
          %189 = sbr.rel (%p187) target = $region24
        $region23: #{tpu_custom_call.1} parent=11 // pred_region
          _
        $region24: #{tpu_custom_call.1} parent=11 // pred_fallthru
          _
        // Predicated region
        $region25: #{tpu_custom_call.1} parent=11 // pred_check
          %p190 = pneg %p138
        $region26: #{tpu_custom_call.1} parent=11 // pred_check_branch
          %192 = sbr.rel (%p190) target = $region28
        $region27: #{tpu_custom_call.1} parent=11 // pred_region
          _
        $region28: #{tpu_custom_call.1} parent=11 // pred_fallthru
          _
      $region12: #{tpu_custom_call.1} parent=5 // pred_fallthru
        _
      %p193 = scmp.lt.s32.totalorder %s14, 4
      // Predicated region
      $region29: #{tpu_custom_call.1} parent=5 // pred_check
        %p194 = pneg %p193
      $region30: #{tpu_custom_call.1} parent=5 // pred_check_branch
        %196 = sbr.rel (%p194) target = $region32
      $region31: #{tpu_custom_call.1} parent=5 // pred_region
        // Predicated region
        $region33: #{tpu_custom_call.1} parent=31 // pred_check
          %p197 = pneg %p48
        $region34: #{tpu_custom_call.1} parent=31 // pred_check_branch
          %199 = sbr.rel (%p197) target = $region36
        $region35: #{tpu_custom_call.1} parent=31 // pred_region
          %p200 = scmp.lt.s32.totalorder %s21, 1
          %s201 = scalar_select %p200, %s21, 1
          %p202 = scmp.lt.s32.totalorder %s22, 1
          %s203 = scalar_select %p202, %s22, 1
          %s204 = smul.addr %s203, 30
          %s205 = smul.addr %s201, 60
          %s206 = sadd.s32 %s204, %s205
          %s207 = smul.addr %s206, 8
          %s208 = scalar_lea.vmem %s0, %s207
        $region36: #{tpu_custom_call.1} parent=31 // pred_fallthru
          _
      $region32: #{tpu_custom_call.1} parent=5 // pred_fallthru
        _
      %p209 = scmp.le.s32.totalorder 1, %s14
      %p210 = scmp.lt.s32.totalorder %s14, 5
      %p211 = pnand %p209, %p210
      %p212 = pneg %p211
      // Predicated region
      $region37: #{tpu_custom_call.1} parent=5 // pred_check
        _
      $region38: #{tpu_custom_call.1} parent=5 // pred_check_branch
        %214 = sbr.rel (%p211) target = $region40
      $region39: #{tpu_custom_call.1} parent=5 // pred_region
        %s215 = ssub.s32 %s14, 1
        %p216 = scmp.lt.s32.totalorder %s23, 1
        %s217 = scalar_select %p216, %s23, 1
        %p218 = scmp.lt.s32.totalorder %s24, 1
        %s219 = scalar_select %p218, %s24, 1
        %s220 = smul.addr %s219, 30
        %s221 = smul.addr %s217, 60
        %s222 = sadd.s32 %s220, %s221
        %s223 = smul.addr %s222, 8
        %s224 = scalar_lea.vmem %s0, %s223
        %p225 = pneg %p54
        %p226 = pneg %p51
        %p227 = pneg %p75
        %p228 = pneg %p72
        %p229 = pneg %p96
        %p230 = pneg %p93
        %p231 = pneg %p117
        %p232 = pneg %p114
        %p233 = pneg %p138
        %p234 = pneg %p135
        %p235 = pneg %p166
        %p236 = pneg %p163
        %s237 = sand.u32 %s153, 1
        %s238 = scalar_lea.sflag [#allocation3], %s237
        %s239 = sand.u32 %s153, 1
        %s240 = smul.addr %s239, 128
        %s241 = scalar_lea.vmem [#allocation2], %s240
        %p242 = scmp.lt.s32.totalorder %s23, 1
        %s243 = scalar_select %p242, %s23, 1
        %p244 = scmp.lt.s32.totalorder %s24, 1
        %s245 = scalar_select %p244, %s24, 1
        %s246 = smul.addr %s245, 30
        %s247 = smul.addr %s243, 60
        %s248 = sadd.s32 %s246, %s247
        %s249 = smul.addr %s248, 8
        %s250 = scalar_lea.vmem %s0, %s249
        %s251 = smul.u32 8, %s24
        %v252 = vld [vmem:[%s1] sm:$0xff]
        %v253 = vld [vmem:[%s1 + $0x8] sm:$0x1]
        %v254 = vld [vmem:[%s250] sm:$0xff]
        %v255 = vld [vmem:[%s250 + $0x8] sm:$0xff]
        %v256 = vld [vmem:[%s250 + $0x18] sm:$0xff]
        %v257 = vld [vmem:[%s250 + $0x20] sm:$0xff]
        %v258 = vld [vmem:[%s250 + $0x30] sm:$0xff]
        %v259 = vld [vmem:[%s250 + $0x38] sm:$0xff]
        %v260 = vld [vmem:[%s250 + $0x48] sm:$0xff]
        %v261 = vld [vmem:[%s250 + $0x50] sm:$0xff]
        %v262 = vld [vmem:[%s250 + $0x60] sm:$0xff]
        %v263 = vld [vmem:[%s250 + $0x68] sm:$0xff]
        %v264 = vld [vmem:[%s250 + $0x78] sm:$0xff]
        %v265 = vld [vmem:[%s250 + $0x80] sm:$0xff]
        %v266 = vld [vmem:[%s250 + $0x90] sm:$0xff]
        %v267 = vld [vmem:[%s250 + $0x98] sm:$0xff]
        %v268 = vld [vmem:[%s250 + $0xa8] sm:$0xff]
        %v269 = vld [vmem:[%s250 + $0xb0] sm:$0xff]
        %v270 = vlaneseq
        %v271 = vshrl.u32 %v270, 7
        %v272 = vsub.s32 0, %v271
        %v273 = vrot.slane %v252, %v272
        %v274 = vmul.f32 %v254, %v273
        %v275 = vmul.f32 %v255, %v273
        %v276 = vmul.f32 %v256, %v273
        %v277 = vmul.f32 %v257, %v273
        %v278 = vmul.f32 %v258, %v273
        %v279 = vmul.f32 %v259, %v273
        %v280 = vmul.f32 %v260, %v273
        %v281 = vmul.f32 %v261, %v273
        %v282 = vmul.f32 %v262, %v273
        %v283 = vmul.f32 %v263, %v273
        %v284 = vmul.f32 %v264, %v273
        %v285 = vmul.f32 %v265, %v273
        %v286 = vmul.f32 %v266, %v273
        %v287 = vmul.f32 %v267, %v273
        %v288 = vmul.f32 %v268, %v273
        %v289 = vmul.f32 %v269, %v273
        %v290 = vadd.f32 %v274, 0.0
        %v291 = vadd.f32 %v275, 0.0
        %v292 = vadd.f32 %v276, 0.0
        %v293 = vadd.f32 %v277, 0.0
        %v294 = vadd.f32 %v278, 0.0
        %v295 = vadd.f32 %v279, 0.0
        %v296 = vadd.f32 %v280, 0.0
        %v297 = vadd.f32 %v281, 0.0
        %v298 = vadd.f32 %v282, 0.0
        %v299 = vadd.f32 %v283, 0.0
        %v300 = vadd.f32 %v284, 0.0
        %v301 = vadd.f32 %v285, 0.0
        %v302 = vadd.f32 %v286, 0.0
        %v303 = vadd.f32 %v287, 0.0
        %v304 = vadd.f32 %v288, 0.0
        %v305 = vadd.f32 %v289, 0.0
        %v306 = vld [vmem:[%s250 + $0x1] sm:$0xff]
        %v307 = vld [vmem:[%s250 + $0x9] sm:$0xff]
        %v308 = vld [vmem:[%s250 + $0x19] sm:$0xff]
        %v309 = vld [vmem:[%s250 + $0x21] sm:$0xff]
        %v310 = vld [vmem:[%s250 + $0x31] sm:$0xff]
        %v311 = vld [vmem:[%s250 + $0x39] sm:$0xff]
        %v312 = vld [vmem:[%s250 + $0x49] sm:$0xff]
        %v313 = vld [vmem:[%s250 + $0x51] sm:$0xff]
        %v314 = vld [vmem:[%s250 + $0x61] sm:$0xff]
        %v315 = vld [vmem:[%s250 + $0x69] sm:$0xff]
        %v316 = vld [vmem:[%s250 + $0x79] sm:$0xff]
        %v317 = vld [vmem:[%s250 + $0x81] sm:$0xff]
        %v318 = vld [vmem:[%s250 + $0x91] sm:$0xff]
        %v319 = vld [vmem:[%s250 + $0x99] sm:$0xff]
        %v320 = vld [vmem:[%s250 + $0xa9] sm:$0xff]
        %v321 = vld [vmem:[%s250 + $0xb1] sm:$0xff]
        %v322 = vlaneseq
        %v323 = vshrl.u32 %v322, 7
        %v324 = vsub.s32 1, %v323
        %v325 = vrot.slane %v252, %v324
        %v326 = vmul.f32 %v306, %v325
        %v327 = vmul.f32 %v307, %v325
        %v328 = vmul.f32 %v308, %v325
        %v329 = vmul.f32 %v309, %v325
        %v330 = vmul.f32 %v310, %v325
        %v331 = vmul.f32 %v311, %v325
        %v332 = vmul.f32 %v312, %v325
        %v333 = vmul.f32 %v313, %v325
        %v334 = vmul.f32 %v314, %v325
        %v335 = vmul.f32 %v315, %v325
        %v336 = vmul.f32 %v316, %v325
        %v337 = vmul.f32 %v317, %v325
        %v338 = vmul.f32 %v318, %v325
        %v339 = vmul.f32 %v319, %v325
        %v340 = vmul.f32 %v320, %v325
        %v341 = vmul.f32 %v321, %v325
        %v342 = vadd.f32 %v290, %v326
        %v343 = vadd.f32 %v291, %v327
        %v344 = vadd.f32 %v292, %v328
        %v345 = vadd.f32 %v293, %v329
        %v346 = vadd.f32 %v294, %v330
        %v347 = vadd.f32 %v295, %v331
        %v348 = vadd.f32 %v296, %v332
        %v349 = vadd.f32 %v297, %v333
        %v350 = vadd.f32 %v298, %v334
        %v351 = vadd.f32 %v299, %v335
        %v352 = vadd.f32 %v300, %v336
        %v353 = vadd.f32 %v301, %v337
        %v354 = vadd.f32 %v302, %v338
        %v355 = vadd.f32 %v303, %v339
        %v356 = vadd.f32 %v304, %v340
        %v357 = vadd.f32 %v305, %v341
        %v358 = vld [vmem:[%s250 + $0x2] sm:$0xff]
        %v359 = vld [vmem:[%s250 + $0xa] sm:$0xff]
        %v360 = vld [vmem:[%s250 + $0x1a] sm:$0xff]
        %v361 = vld [vmem:[%s250 + $0x22] sm:$0xff]
        %v362 = vld [vmem:[%s250 + $0x32] sm:$0xff]
        %v363 = vld [vmem:[%s250 + $0x3a] sm:$0xff]
        %v364 = vld [vmem:[%s250 + $0x4a] sm:$0xff]
        %v365 = vld [vmem:[%s250 + $0x52] sm:$0xff]
        %v366 = vld [vmem:[%s250 + $0x62] sm:$0xff]
        %v367 = vld [vmem:[%s250 + $0x6a] sm:$0xff]
        %v368 = vld [vmem:[%s250 + $0x7a] sm:$0xff]
        %v369 = vld [vmem:[%s250 + $0x82] sm:$0xff]
        %v370 = vld [vmem:[%s250 + $0x92] sm:$0xff]
        %v371 = vld [vmem:[%s250 + $0x9a] sm:$0xff]
        %v372 = vld [vmem:[%s250 + $0xaa] sm:$0xff]
        %v373 = vld [vmem:[%s250 + $0xb2] sm:$0xff]
        %v374 = vlaneseq
        %v375 = vshrl.u32 %v374, 7
        %v376 = vsub.s32 2, %v375
        %v377 = vrot.slane %v252, %v376
        %v378 = vmul.f32 %v358, %v377
        %v379 = vmul.f32 %v359, %v377
        %v380 = vmul.f32 %v360, %v377
        %v381 = vmul.f32 %v361, %v377
        %v382 = vmul.f32 %v362, %v377
        %v383 = vmul.f32 %v363, %v377
        %v384 = vmul.f32 %v364, %v377
        %v385 = vmul.f32 %v365, %v377
        %v386 = vmul.f32 %v366, %v377
        %v387 = vmul.f32 %v367, %v377
        %v388 = vmul.f32 %v368, %v377
        %v389 = vmul.f32 %v369, %v377
        %v390 = vmul.f32 %v370, %v377
        %v391 = vmul.f32 %v371, %v377
        %v392 = vmul.f32 %v372, %v377
        %v393 = vmul.f32 %v373, %v377
        %v394 = vadd.f32 %v342, %v378
        %v395 = vadd.f32 %v343, %v379
        %v396 = vadd.f32 %v344, %v380
        %v397 = vadd.f32 %v345, %v381
        %v398 = vadd.f32 %v346, %v382
        %v399 = vadd.f32 %v347, %v383
        %v400 = vadd.f32 %v348, %v384
        %v401 = vadd.f32 %v349, %v385
        %v402 = vadd.f32 %v350, %v386
        %v403 = vadd.f32 %v351, %v387
        %v404 = vadd.f32 %v352, %v388
        %v405 = vadd.f32 %v353, %v389
        %v406 = vadd.f32 %v354, %v390
        %v407 = vadd.f32 %v355, %v391
        %v408 = vadd.f32 %v356, %v392
        %v409 = vadd.f32 %v357, %v393
        %s410 = scalar_lea.vmem %s250, 24
        %v411 = vld [vmem:[%s410] sm:$0xff]
        %v412 = vld [vmem:[%s410 + $0x8] sm:$0xff]
        %v413 = vld [vmem:[%s410 + $0x18] sm:$0xff]
        %v414 = vld [vmem:[%s410 + $0x20] sm:$0xff]
        %v415 = vld [vmem:[%s410 + $0x30] sm:$0xff]
        %v416 = vld [vmem:[%s410 + $0x38] sm:$0xff]
        %v417 = vld [vmem:[%s410 + $0x48] sm:$0xff]
        %v418 = vld [vmem:[%s410 + $0x50] sm:$0xff]
        %v419 = vld [vmem:[%s410 + $0x60] sm:$0xff]
        %v420 = vld [vmem:[%s410 + $0x68] sm:$0xff]
        %v421 = vld [vmem:[%s410 + $0x78] sm:$0xff]
        %v422 = vld [vmem:[%s410 + $0x80] sm:$0xff]
        %v423 = vld [vmem:[%s410 + $0x90] sm:$0xff]
        %v424 = vld [vmem:[%s410 + $0x98] sm:$0xff]
        %v425 = vld [vmem:[%s410 + $0xa8] sm:$0xff]
        %v426 = vld [vmem:[%s410 + $0xb0] sm:$0xff]
        %v427 = vlaneseq
        %v428 = vshrl.u32 %v427, 7
        %v429 = vsub.s32 3, %v428
        %v430 = vrot.slane %v252, %v429
        %v431 = vmul.f32 %v411, %v430
        %v432 = vmul.f32 %v412, %v430
        %v433 = vmul.f32 %v413, %v430
        %v434 = vmul.f32 %v414, %v430
        %v435 = vmul.f32 %v415, %v430
        %v436 = vmul.f32 %v416, %v430
        %v437 = vmul.f32 %v417, %v430
        %v438 = vmul.f32 %v418, %v430
        %v439 = vmul.f32 %v419, %v430
        %v440 = vmul.f32 %v420, %v430
        %v441 = vmul.f32 %v421, %v430
        %v442 = vmul.f32 %v422, %v430
        %v443 = vmul.f32 %v423, %v430
        %v444 = vmul.f32 %v424, %v430
        %v445 = vmul.f32 %v425, %v430
        %v446 = vmul.f32 %v426, %v430
        %v447 = vadd.f32 %v394, %v431
        %v448 = vadd.f32 %v395, %v432
        %v449 = vadd.f32 %v396, %v433
        %v450 = vadd.f32 %v397, %v434
        %v451 = vadd.f32 %v398, %v435
        %v452 = vadd.f32 %v399, %v436
        %v453 = vadd.f32 %v400, %v437
        %v454 = vadd.f32 %v401, %v438
        %v455 = vadd.f32 %v402, %v439
        %v456 = vadd.f32 %v403, %v440
        %v457 = vadd.f32 %v404, %v441
        %v458 = vadd.f32 %v405, %v442
        %v459 = vadd.f32 %v406, %v443
        %v460 = vadd.f32 %v407, %v444
        %v461 = vadd.f32 %v408, %v445
        %v462 = vadd.f32 %v409, %v446
        %v463 = vld [vmem:[%s410 + $0x1] sm:$0xff]
        %v464 = vld [vmem:[%s410 + $0x9] sm:$0xff]
        %v465 = vld [vmem:[%s410 + $0x19] sm:$0xff]
        %v466 = vld [vmem:[%s410 + $0x21] sm:$0xff]
        %v467 = vld [vmem:[%s410 + $0x31] sm:$0xff]
        %v468 = vld [vmem:[%s410 + $0x39] sm:$0xff]
        %v469 = vld [vmem:[%s410 + $0x49] sm:$0xff]
        %v470 = vld [vmem:[%s410 + $0x51] sm:$0xff]
        %v471 = vld [vmem:[%s410 + $0x61] sm:$0xff]
        %v472 = vld [vmem:[%s410 + $0x69] sm:$0xff]
        %v473 = vld [vmem:[%s410 + $0x79] sm:$0xff]
        %v474 = vld [vmem:[%s410 + $0x81] sm:$0xff]
        %v475 = vld [vmem:[%s410 + $0x91] sm:$0xff]
        %v476 = vld [vmem:[%s410 + $0x99] sm:$0xff]
        %v477 = vld [vmem:[%s410 + $0xa9] sm:$0xff]
        %v478 = vld [vmem:[%s410 + $0xb1] sm:$0xff]
        %v479 = vlaneseq
        %v480 = vshrl.u32 %v479, 7
        %v481 = vsub.s32 4, %v480
        %v482 = vrot.slane %v252, %v481
        %v483 = vmul.f32 %v463, %v482
        %v484 = vmul.f32 %v464, %v482
        %v485 = vmul.f32 %v465, %v482
        %v486 = vmul.f32 %v466, %v482
        %v487 = vmul.f32 %v467, %v482
        %v488 = vmul.f32 %v468, %v482
        %v489 = vmul.f32 %v469, %v482
        %v490 = vmul.f32 %v470, %v482
        %v491 = vmul.f32 %v471, %v482
        %v492 = vmul.f32 %v472, %v482
        %v493 = vmul.f32 %v473, %v482
        %v494 = vmul.f32 %v474, %v482
        %v495 = vmul.f32 %v475, %v482
        %v496 = vmul.f32 %v476, %v482
        %v497 = vmul.f32 %v477, %v482
        %v498 = vmul.f32 %v478, %v482
        %v499 = vadd.f32 %v447, %v483
        %v500 = vadd.f32 %v448, %v484
        %v501 = vadd.f32 %v449, %v485
        %v502 = vadd.f32 %v450, %v486
        %v503 = vadd.f32 %v451, %v487
        %v504 = vadd.f32 %v452, %v488
        %v505 = vadd.f32 %v453, %v489
        %v506 = vadd.f32 %v454, %v490
        %v507 = vadd.f32 %v455, %v491
        %v508 = vadd.f32 %v456, %v492
        %v509 = vadd.f32 %v457, %v493
        %v510 = vadd.f32 %v458, %v494
        %v511 = vadd.f32 %v459, %v495
        %v512 = vadd.f32 %v460, %v496
        %v513 = vadd.f32 %v461, %v497
        %v514 = vadd.f32 %v462, %v498
        %v515 = vld [vmem:[%s410 + $0x2] sm:$0xff]
        %v516 = vld [vmem:[%s410 + $0xa] sm:$0xff]
        %v517 = vld [vmem:[%s410 + $0x1a] sm:$0xff]
        %v518 = vld [vmem:[%s410 + $0x22] sm:$0xff]
        %v519 = vld [vmem:[%s410 + $0x32] sm:$0xff]
        %v520 = vld [vmem:[%s410 + $0x3a] sm:$0xff]
        %v521 = vld [vmem:[%s410 + $0x4a] sm:$0xff]
        %v522 = vld [vmem:[%s410 + $0x52] sm:$0xff]
        %v523 = vld [vmem:[%s410 + $0x62] sm:$0xff]
        %v524 = vld [vmem:[%s410 + $0x6a] sm:$0xff]
        %v525 = vld [vmem:[%s410 + $0x7a] sm:$0xff]
        %v526 = vld [vmem:[%s410 + $0x82] sm:$0xff]
        %v527 = vld [vmem:[%s410 + $0x92] sm:$0xff]
        %v528 = vld [vmem:[%s410 + $0x9a] sm:$0xff]
        %v529 = vld [vmem:[%s410 + $0xaa] sm:$0xff]
        %v530 = vld [vmem:[%s410 + $0xb2] sm:$0xff]
        %v531 = vlaneseq
        %v532 = vshrl.u32 %v531, 7
        %v533 = vsub.s32 5, %v532
        %v534 = vrot.slane %v252, %v533
        %v535 = vmul.f32 %v515, %v534
        %v536 = vmul.f32 %v516, %v534
        %v537 = vmul.f32 %v517, %v534
        %v538 = vmul.f32 %v518, %v534
        %v539 = vmul.f32 %v519, %v534
        %v540 = vmul.f32 %v520, %v534
        %v541 = vmul.f32 %v521, %v534
        %v542 = vmul.f32 %v522, %v534
        %v543 = vmul.f32 %v523, %v534
        %v544 = vmul.f32 %v524, %v534
        %v545 = vmul.f32 %v525, %v534
        %v546 = vmul.f32 %v526, %v534
        %v547 = vmul.f32 %v527, %v534
        %v548 = vmul.f32 %v528, %v534
        %v549 = vmul.f32 %v529, %v534
        %v550 = vmul.f32 %v530, %v534
        %v551 = vadd.f32 %v499, %v535
        %v552 = vadd.f32 %v500, %v536
        %v553 = vadd.f32 %v501, %v537
        %v554 = vadd.f32 %v502, %v538
        %v555 = vadd.f32 %v503, %v539
        %v556 = vadd.f32 %v504, %v540
        %v557 = vadd.f32 %v505, %v541
        %v558 = vadd.f32 %v506, %v542
        %v559 = vadd.f32 %v507, %v543
        %v560 = vadd.f32 %v508, %v544
        %v561 = vadd.f32 %v509, %v545
        %v562 = vadd.f32 %v510, %v546
        %v563 = vadd.f32 %v511, %v547
        %v564 = vadd.f32 %v512, %v548
        %v565 = vadd.f32 %v513, %v549
        %v566 = vadd.f32 %v514, %v550
        %s567 = scalar_lea.vmem %s250, 48
        %v568 = vld [vmem:[%s567] sm:$0xff]
        %v569 = vld [vmem:[%s567 + $0x8] sm:$0xff]
        %v570 = vld [vmem:[%s567 + $0x18] sm:$0xff]
        %v571 = vld [vmem:[%s567 + $0x20] sm:$0xff]
        %v572 = vld [vmem:[%s567 + $0x30] sm:$0xff]
        %v573 = vld [vmem:[%s567 + $0x38] sm:$0xff]
        %v574 = vld [vmem:[%s567 + $0x48] sm:$0xff]
        %v575 = vld [vmem:[%s567 + $0x50] sm:$0xff]
        %v576 = vld [vmem:[%s567 + $0x60] sm:$0xff]
        %v577 = vld [vmem:[%s567 + $0x68] sm:$0xff]
        %v578 = vld [vmem:[%s567 + $0x78] sm:$0xff]
        %v579 = vld [vmem:[%s567 + $0x80] sm:$0xff]
        %v580 = vld [vmem:[%s567 + $0x90] sm:$0xff]
        %v581 = vld [vmem:[%s567 + $0x98] sm:$0xff]
        %v582 = vld [vmem:[%s567 + $0xa8] sm:$0xff]
        %v583 = vld [vmem:[%s567 + $0xb0] sm:$0xff]
        %v584 = vlaneseq
        %v585 = vshrl.u32 %v584, 7
        %v586 = vsub.s32 6, %v585
        %v587 = vrot.slane %v252, %v586
        %v588 = vmul.f32 %v568, %v587
        %v589 = vmul.f32 %v569, %v587
        %v590 = vmul.f32 %v570, %v587
        %v591 = vmul.f32 %v571, %v587
        %v592 = vmul.f32 %v572, %v587
        %v593 = vmul.f32 %v573, %v587
        %v594 = vmul.f32 %v574, %v587
        %v595 = vmul.f32 %v575, %v587
        %v596 = vmul.f32 %v576, %v587
        %v597 = vmul.f32 %v577, %v587
        %v598 = vmul.f32 %v578, %v587
        %v599 = vmul.f32 %v579, %v587
        %v600 = vmul.f32 %v580, %v587
        %v601 = vmul.f32 %v581, %v587
        %v602 = vmul.f32 %v582, %v587
        %v603 = vmul.f32 %v583, %v587
        %v604 = vadd.f32 %v551, %v588
        %v605 = vadd.f32 %v552, %v589
        %v606 = vadd.f32 %v553, %v590
        %v607 = vadd.f32 %v554, %v591
        %v608 = vadd.f32 %v555, %v592
        %v609 = vadd.f32 %v556, %v593
        %v610 = vadd.f32 %v557, %v594
        %v611 = vadd.f32 %v558, %v595
        %v612 = vadd.f32 %v559, %v596
        %v613 = vadd.f32 %v560, %v597
        %v614 = vadd.f32 %v561, %v598
        %v615 = vadd.f32 %v562, %v599
        %v616 = vadd.f32 %v563, %v600
        %v617 = vadd.f32 %v564, %v601
        %v618 = vadd.f32 %v565, %v602
        %v619 = vadd.f32 %v566, %v603
        %v620 = vld [vmem:[%s567 + $0x1] sm:$0xff]
        %v621 = vld [vmem:[%s567 + $0x9] sm:$0xff]
        %v622 = vld [vmem:[%s567 + $0x19] sm:$0xff]
        %v623 = vld [vmem:[%s567 + $0x21] sm:$0xff]
        %v624 = vld [vmem:[%s567 + $0x31] sm:$0xff]
        %v625 = vld [vmem:[%s567 + $0x39] sm:$0xff]
        %v626 = vld [vmem:[%s567 + $0x49] sm:$0xff]
        %v627 = vld [vmem:[%s567 + $0x51] sm:$0xff]
        %v628 = vld [vmem:[%s567 + $0x61] sm:$0xff]
        %v629 = vld [vmem:[%s567 + $0x69] sm:$0xff]
        %v630 = vld [vmem:[%s567 + $0x79] sm:$0xff]
        %v631 = vld [vmem:[%s567 + $0x81] sm:$0xff]
        %v632 = vld [vmem:[%s567 + $0x91] sm:$0xff]
        %v633 = vld [vmem:[%s567 + $0x99] sm:$0xff]
        %v634 = vld [vmem:[%s567 + $0xa9] sm:$0xff]
        %v635 = vld [vmem:[%s567 + $0xb1] sm:$0xff]
        %v636 = vlaneseq
        %v637 = vshrl.u32 %v636, 7
        %v638 = vsub.s32 7, %v637
        %v639 = vrot.slane %v252, %v638
        %v640 = vmul.f32 %v620, %v639
        %v641 = vmul.f32 %v621, %v639
        %v642 = vmul.f32 %v622, %v639
        %v643 = vmul.f32 %v623, %v639
        %v644 = vmul.f32 %v624, %v639
        %v645 = vmul.f32 %v625, %v639
        %v646 = vmul.f32 %v626, %v639
        %v647 = vmul.f32 %v627, %v639
        %v648 = vmul.f32 %v628, %v639
        %v649 = vmul.f32 %v629, %v639
        %v650 = vmul.f32 %v630, %v639
        %v651 = vmul.f32 %v631, %v639
        %v652 = vmul.f32 %v632, %v639
        %v653 = vmul.f32 %v633, %v639
        %v654 = vmul.f32 %v634, %v639
        %v655 = vmul.f32 %v635, %v639
        %v656 = vadd.f32 %v604, %v640
        %v657 = vadd.f32 %v605, %v641
        %v658 = vadd.f32 %v606, %v642
        %v659 = vadd.f32 %v607, %v643
        %v660 = vadd.f32 %v608, %v644
        %v661 = vadd.f32 %v609, %v645
        %v662 = vadd.f32 %v610, %v646
        %v663 = vadd.f32 %v611, %v647
        %v664 = vadd.f32 %v612, %v648
        %v665 = vadd.f32 %v613, %v649
        %v666 = vadd.f32 %v614, %v650
        %v667 = vadd.f32 %v615, %v651
        %v668 = vadd.f32 %v616, %v652
        %v669 = vadd.f32 %v617, %v653
        %v670 = vadd.f32 %v618, %v654
        %v671 = vadd.f32 %v619, %v655
        %v672 = vld [vmem:[%s567 + $0x2] sm:$0xff]
        %v673 = vld [vmem:[%s567 + $0xa] sm:$0xff]
        %v674 = vld [vmem:[%s567 + $0x1a] sm:$0xff]
        %v675 = vld [vmem:[%s567 + $0x22] sm:$0xff]
        %v676 = vld [vmem:[%s567 + $0x32] sm:$0xff]
        %v677 = vld [vmem:[%s567 + $0x3a] sm:$0xff]
        %v678 = vld [vmem:[%s567 + $0x4a] sm:$0xff]
        %v679 = vld [vmem:[%s567 + $0x52] sm:$0xff]
        %v680 = vld [vmem:[%s567 + $0x62] sm:$0xff]
        %v681 = vld [vmem:[%s567 + $0x6a] sm:$0xff]
        %v682 = vld [vmem:[%s567 + $0x7a] sm:$0xff]
        %v683 = vld [vmem:[%s567 + $0x82] sm:$0xff]
        %v684 = vld [vmem:[%s567 + $0x92] sm:$0xff]
        %v685 = vld [vmem:[%s567 + $0x9a] sm:$0xff]
        %v686 = vld [vmem:[%s567 + $0xaa] sm:$0xff]
        %v687 = vld [vmem:[%s567 + $0xb2] sm:$0xff]
        %v688 = vlaneseq
        %v689 = vshrl.u32 %v688, 7
        %v690 = vsub.s32 0, %v689
        %v691 = vrot.slane %v253, %v690
        %v692 = vmul.f32 %v672, %v691
        %v693 = vmul.f32 %v673, %v691
        %v694 = vmul.f32 %v674, %v691
        %v695 = vmul.f32 %v675, %v691
        %v696 = vmul.f32 %v676, %v691
        %v697 = vmul.f32 %v677, %v691
        %v698 = vmul.f32 %v678, %v691
        %v699 = vmul.f32 %v679, %v691
        %v700 = vmul.f32 %v680, %v691
        %v701 = vmul.f32 %v681, %v691
        %v702 = vmul.f32 %v682, %v691
        %v703 = vmul.f32 %v683, %v691
        %v704 = vmul.f32 %v684, %v691
        %v705 = vmul.f32 %v685, %v691
        %v706 = vmul.f32 %v686, %v691
        %v707 = vmul.f32 %v687, %v691
        %v708 = vadd.f32 %v656, %v692
        %v709 = vadd.f32 %v657, %v693
        %v710 = vadd.f32 %v658, %v694
        %v711 = vadd.f32 %v659, %v695
        %v712 = vadd.f32 %v660, %v696
        %v713 = vadd.f32 %v661, %v697
        %v714 = vadd.f32 %v662, %v698
        %v715 = vadd.f32 %v663, %v699
        %v716 = vadd.f32 %v664, %v700
        %v717 = vadd.f32 %v665, %v701
        %v718 = vadd.f32 %v666, %v702
        %v719 = vadd.f32 %v667, %v703
        %v720 = vadd.f32 %v668, %v704
        %v721 = vadd.f32 %v669, %v705
        %v722 = vadd.f32 %v670, %v706
        %v723 = vadd.f32 %v671, %v707
        %v724 = vld [vmem:[%s2] sm:$0x1]
        %v726 = vlaneseq
        %v727 = vshrl.u32 %v726, 7
        %v728 = vsub.s32 0, %v727
        %v729 = vrot.slane %v724, %v728
        %v731 = vadd.f32 %v708, %v729
        %v732 = vadd.f32 %v709, %v729
        %v733 = vadd.f32 %v710, %v729
        %v734 = vadd.f32 %v711, %v729
        %v735 = vadd.f32 %v712, %v729
        %v736 = vadd.f32 %v713, %v729
        %v737 = vadd.f32 %v714, %v729
        %v738 = vadd.f32 %v715, %v729
        %v739 = vadd.f32 %v716, %v729
        %v740 = vadd.f32 %v717, %v729
        %v741 = vadd.f32 %v718, %v729
        %v742 = vadd.f32 %v719, %v729
        %v743 = vadd.f32 %v720, %v729
        %v744 = vadd.f32 %v721, %v729
        %v745 = vadd.f32 %v722, %v729
        %v746 = vadd.f32 %v723, %v729
        %v747 = vmul.f32 %v731, 0.5
        %v748 = vmul.f32 %v732, 0.5
        %v749 = vmul.f32 %v733, 0.5
        %v750 = vmul.f32 %v734, 0.5
        %v751 = vmul.f32 %v735, 0.5
        %v752 = vmul.f32 %v736, 0.5
        %v753 = vmul.f32 %v737, 0.5
        %v754 = vmul.f32 %v738, 0.5
        %v755 = vmul.f32 %v739, 0.5
        %v756 = vmul.f32 %v740, 0.5
        %v757 = vmul.f32 %v741, 0.5
        %v758 = vmul.f32 %v742, 0.5
        %v759 = vmul.f32 %v743, 0.5
        %v760 = vmul.f32 %v744, 0.5
        %v761 = vmul.f32 %v745, 0.5
        %v762 = vmul.f32 %v746, 0.5
        %v763 = vtanh.pop %v747
        %v764 = vtanh.pop %v748
        %v765 = vtanh.pop %v749
        %v766 = vtanh.pop %v750
        %v767 = vtanh.pop %v751
        %v768 = vtanh.pop %v752
        %v769 = vtanh.pop %v753
        %v770 = vtanh.pop %v754
        %v771 = vtanh.pop %v755
        %v772 = vtanh.pop %v756
        %v773 = vtanh.pop %v757
        %v774 = vtanh.pop %v758
        %v775 = vtanh.pop %v759
        %v776 = vtanh.pop %v760
        %v777 = vtanh.pop %v761
        %v778 = vtanh.pop %v762
        %v779 = vmul.f32 %v763, 0.5
        %v780 = vmul.f32 %v764, 0.5
        %v781 = vmul.f32 %v765, 0.5
        %v782 = vmul.f32 %v766, 0.5
        %v783 = vmul.f32 %v767, 0.5
        %v784 = vmul.f32 %v768, 0.5
        %v785 = vmul.f32 %v769, 0.5
        %v786 = vmul.f32 %v770, 0.5
        %v787 = vmul.f32 %v771, 0.5
        %v788 = vmul.f32 %v772, 0.5
        %v789 = vmul.f32 %v773, 0.5
        %v790 = vmul.f32 %v774, 0.5
        %v791 = vmul.f32 %v775, 0.5
        %v792 = vmul.f32 %v776, 0.5
        %v793 = vmul.f32 %v777, 0.5
        %v794 = vmul.f32 %v778, 0.5
        %v795 = vadd.f32 %v779, 0.5
        %v796 = vadd.f32 %v780, 0.5
        %v797 = vadd.f32 %v781, 0.5
        %v798 = vadd.f32 %v782, 0.5
        %v799 = vadd.f32 %v783, 0.5
        %v800 = vadd.f32 %v784, 0.5
        %v801 = vadd.f32 %v785, 0.5
        %v802 = vadd.f32 %v786, 0.5
        %v803 = vadd.f32 %v787, 0.5
        %v804 = vadd.f32 %v788, 0.5
        %v805 = vadd.f32 %v789, 0.5
        %v806 = vadd.f32 %v790, 0.5
        %v807 = vadd.f32 %v791, 0.5
        %v808 = vadd.f32 %v792, 0.5
        %v809 = vadd.f32 %v793, 0.5
        %v810 = vadd.f32 %v794, 0.5
        %v811 = vmul.f32 %v731, %v795
        %v812 = vmul.f32 %v732, %v796
        %v813 = vmul.f32 %v733, %v797
        %v814 = vmul.f32 %v734, %v798
        %v815 = vmul.f32 %v735, %v799
        %v816 = vmul.f32 %v736, %v800
        %v817 = vmul.f32 %v737, %v801
        %v818 = vmul.f32 %v738, %v802
        %v819 = vmul.f32 %v739, %v803
        %v820 = vmul.f32 %v740, %v804
        %v821 = vmul.f32 %v741, %v805
        %v822 = vmul.f32 %v742, %v806
        %v823 = vmul.f32 %v743, %v807
        %v824 = vmul.f32 %v744, %v808
        %v825 = vmul.f32 %v745, %v809
        %v826 = vmul.f32 %v746, %v810
        %v827 = vld [vmem:[%s3] sm:$0xff]
        %v828 = vld [vmem:[%s3 + $0x8] sm:$0xff]
        %v829 = vld [vmem:[%s3 + $0x10] sm:$0xff]
        %v830 = vld [vmem:[%s3 + $0x18] sm:$0xff]
        %v831 = vld [vmem:[%s3 + $0x20] sm:$0xff]
        %v832 = vld [vmem:[%s3 + $0x28] sm:$0xff]
        %v833 = vld [vmem:[%s3 + $0x30] sm:$0xff]
        %v834 = vld [vmem:[%s3 + $0x38] sm:$0xff]
        %v835 = vld [vmem:[%s3 + $0x40] sm:$0xff]
        %v836 = vld [vmem:[%s3 + $0x48] sm:$0xff]
        %v837 = vld [vmem:[%s3 + $0x50] sm:$0xff]
        %v838 = vld [vmem:[%s3 + $0x58] sm:$0xff]
        %v839 = vld [vmem:[%s3 + $0x60] sm:$0xff]
        %v840 = vld [vmem:[%s3 + $0x68] sm:$0xff]
        %v841 = vld [vmem:[%s3 + $0x70] sm:$0xff]
        %v842 = vld [vmem:[%s3 + $0x78] sm:$0xff]
        %v843 = vld [vmem:[%s4] sm:$0x1]
        %v845 = vlaneseq
        %v846 = vshrl.u32 %v845, 7
        %v847 = vsub.s32 0, %v846
        %v848 = vrot.slane %v843, %v847
        %850 = vmatprep.subr.mxu0 0.0
        %851 = vmatpush1.msra.mxu0 %v827
        %852 = vmatprep.subr.mxu0 0.0
        %853 = vmatpush1.msra.mxu0 %v828
        %854 = vmatprep.subr.mxu0 0.0
        %855 = vmatpush1.msra.mxu0 %v829
        %856 = vmatprep.subr.mxu0 0.0
        %857 = vmatpush1.msra.mxu0 %v830
        %858 = vmatprep.subr.mxu0 0.0
        %859 = vmatpush1.msra.mxu0 %v831
        %860 = vmatprep.subr.mxu0 0.0
        %861 = vmatpush1.msra.mxu0 %v832
        %862 = vmatprep.subr.mxu0 0.0
        %863 = vmatpush1.msra.mxu0 %v833
        %864 = vmatprep.subr.mxu0 0.0
        %865 = vmatpush1.msra.mxu0 %v834
        %866 = vmatprep.subr.mxu0 0.0
        %867 = vmatpush1.msra.mxu0 %v835
        %868 = vmatprep.subr.mxu0 0.0
        %869 = vmatpush1.msra.mxu0 %v836
        %870 = vmatprep.subr.mxu0 0.0
        %871 = vmatpush1.msra.mxu0 %v837
        %872 = vmatprep.subr.mxu0 0.0
        %873 = vmatpush1.msra.mxu0 %v838
        %874 = vmatprep.subr.mxu0 0.0
        %875 = vmatpush1.msra.mxu0 %v839
        %876 = vmatprep.subr.mxu0 0.0
        %877 = vmatpush1.msra.mxu0 %v840
        %878 = vmatprep.subr.mxu0 0.0
        %879 = vmatpush1.msra.mxu0 %v841
        %880 = vmatprep.subr.mxu0 0.0
        %881 = vmatpush1.msra.mxu0 %v842
        %882 = vmatprep.subr.mxu0 0.0
        %883 = vmatpush1.msra.mxu0 0.0
        %884 = vmatprep.subr.mxu0 0.0
        %885 = vmatpush1.msra.mxu0 0.0
        %886 = vmatprep.subr.mxu0 0.0
        %887 = vmatpush1.msra.mxu0 0.0
        %888 = vmatprep.subr.mxu0 0.0
        %889 = vmatpush1.msra.mxu0 0.0
        %890 = vmatprep.subr.mxu0 0.0
        %891 = vmatpush1.msra.mxu0 0.0
        %892 = vmatprep.subr.mxu0 0.0
        %893 = vmatpush1.msra.mxu0 0.0
        %894 = vmatprep.subr.mxu0 0.0
        %895 = vmatpush1.msra.mxu0 0.0
        %896 = vmatprep.subr.mxu0 0.0
        %897 = vmatpush1.msra.mxu0 0.0
        %898 = vmatprep.subr.mxu0 0.0
        %899 = vmatpush1.msra.mxu0 0.0
        %900 = vmatprep.subr.mxu0 0.0
        %901 = vmatpush1.msra.mxu0 0.0
        %902 = vmatprep.subr.mxu0 0.0
        %903 = vmatpush1.msra.mxu0 0.0
        %904 = vmatprep.subr.mxu0 0.0
        %905 = vmatpush1.msra.mxu0 0.0
        %906 = vmatprep.subr.mxu0 0.0
        %907 = vmatpush1.msra.mxu0 0.0
        %908 = vmatprep.subr.mxu0 0.0
        %909 = vmatpush1.msra.mxu0 0.0
        %910 = vmatprep.subr.mxu0 0.0
        %911 = vmatpush1.msra.mxu0 0.0
        %912 = vmatprep.subr.mxu0 0.0
        %913 = vmatpush1.msra.mxu0 0.0
        %914 = vmatprep.mubr.f32.mxu0 0.0
        %915 = vmatmul.mubr.f32.gmra.mrb[0].mxu0 %v811
        %v916 = vpop.f32.mrb[0].mxu0
        %v917 = vadd.f32 %v848, %v916
        %v918 = vpop.f32.mrb[0].mxu0
        %919 = vmatprep.mubr.f32.mxu0 0.0
        %920 = vmatmul.mubr.f32.gmra.mrb[0].mxu0 %v812
        %v921 = vpop.f32.mrb[0].mxu0
        %v922 = vadd.f32 %v848, %v921
        %v923 = vpop.f32.mrb[0].mxu0
        %924 = vmatprep.mubr.f32.mxu0 0.0
        %925 = vmatmul.mubr.f32.gmra.mrb[0].mxu0 %v813
        %v926 = vpop.f32.mrb[0].mxu0
        %v927 = vadd.f32 %v848, %v926
        %v928 = vpop.f32.mrb[0].mxu0
        %929 = vmatprep.mubr.f32.mxu0 0.0
        %930 = vmatmul.mubr.f32.gmra.mrb[0].mxu0 %v814
        %v931 = vpop.f32.mrb[0].mxu0
        %v932 = vadd.f32 %v848, %v931
        %v933 = vpop.f32.mrb[0].mxu0
        %934 = vmatprep.mubr.f32.mxu0 0.0
        %935 = vmatmul.mubr.f32.gmra.mrb[0].mxu0 %v815
        %v936 = vpop.f32.mrb[0].mxu0
        %v937 = vadd.f32 %v848, %v936
        %v938 = vpop.f32.mrb[0].mxu0
        %939 = vmatprep.mubr.f32.mxu0 0.0
        %940 = vmatmul.mubr.f32.gmra.mrb[0].mxu0 %v816
        %v941 = vpop.f32.mrb[0].mxu0
        %v942 = vadd.f32 %v848, %v941
        %v943 = vpop.f32.mrb[0].mxu0
        %944 = vmatprep.mubr.f32.mxu0 0.0
        %945 = vmatmul.mubr.f32.gmra.mrb[0].mxu0 %v817
        %v946 = vpop.f32.mrb[0].mxu0
        %v947 = vadd.f32 %v848, %v946
        %v948 = vpop.f32.mrb[0].mxu0
        %949 = vmatprep.mubr.f32.mxu0 0.0
        %950 = vmatmul.mubr.f32.gmra.mrb[0].mxu0 %v818
        %v951 = vpop.f32.mrb[0].mxu0
        %v952 = vadd.f32 %v848, %v951
        %v953 = vpop.f32.mrb[0].mxu0
        %954 = vmatprep.mubr.f32.mxu0 0.0
        %955 = vmatmul.mubr.f32.gmra.mrb[0].mxu0 %v819
        %v956 = vpop.f32.mrb[0].mxu0
        %v957 = vadd.f32 %v848, %v956
        %v958 = vpop.f32.mrb[0].mxu0
        %959 = vmatprep.mubr.f32.mxu0 0.0
        %960 = vmatmul.mubr.f32.gmra.mrb[0].mxu0 %v820
        %v961 = vpop.f32.mrb[0].mxu0
        %v962 = vadd.f32 %v848, %v961
        %v963 = vpop.f32.mrb[0].mxu0
        %964 = vmatprep.mubr.f32.mxu0 0.0
        %965 = vmatmul.mubr.f32.gmra.mrb[0].mxu0 %v821
        %v966 = vpop.f32.mrb[0].mxu0
        %v967 = vadd.f32 %v848, %v966
        %v968 = vpop.f32.mrb[0].mxu0
        %969 = vmatprep.mubr.f32.mxu0 0.0
        %970 = vmatmul.mubr.f32.gmra.mrb[0].mxu0 %v822
        %v971 = vpop.f32.mrb[0].mxu0
        %v972 = vadd.f32 %v848, %v971
        %v973 = vpop.f32.mrb[0].mxu0
        %974 = vmatprep.mubr.f32.mxu0 0.0
        %975 = vmatmul.mubr.f32.gmra.mrb[0].mxu0 %v823
        %v976 = vpop.f32.mrb[0].mxu0
        %v977 = vadd.f32 %v848, %v976
        %v978 = vpop.f32.mrb[0].mxu0
        %979 = vmatprep.mubr.f32.mxu0 0.0
        %980 = vmatmul.mubr.f32.gmra.mrb[0].mxu0 %v824
        %v981 = vpop.f32.mrb[0].mxu0
        %v982 = vadd.f32 %v848, %v981
        %v983 = vpop.f32.mrb[0].mxu0
        %984 = vmatprep.mubr.f32.mxu0 0.0
        %985 = vmatmul.mubr.f32.gmra.mrb[0].mxu0 %v825
        %v986 = vpop.f32.mrb[0].mxu0
        %v987 = vadd.f32 %v848, %v986
        %v988 = vpop.f32.mrb[0].mxu0
        %989 = vmatprep.mubr.f32.mxu0 0.0
        %990 = vmatmul.mubr.f32.gmra.mrb[0].mxu0 %v826
        %v991 = vpop.f32.mrb[0].mxu0
        %v992 = vadd.f32 %v848, %v991
        %v993 = vpop.f32.mrb[0].mxu0
        %994 = vdwg.mxu0
        %v995 = vmul.f32 %v917, 0.5
        %v996 = vmul.f32 %v922, 0.5
        %v997 = vmul.f32 %v927, 0.5
        %v998 = vmul.f32 %v932, 0.5
        %v999 = vmul.f32 %v937, 0.5
        %v1000 = vmul.f32 %v942, 0.5
        %v1001 = vmul.f32 %v947, 0.5
        %v1002 = vmul.f32 %v952, 0.5
        %v1003 = vmul.f32 %v957, 0.5
        %v1004 = vmul.f32 %v962, 0.5
        %v1005 = vmul.f32 %v967, 0.5
        %v1006 = vmul.f32 %v972, 0.5
        %v1007 = vmul.f32 %v977, 0.5
        %v1008 = vmul.f32 %v982, 0.5
        %v1009 = vmul.f32 %v987, 0.5
        %v1010 = vmul.f32 %v992, 0.5
        %v1011 = vtanh.pop %v995
        %v1012 = vtanh.pop %v996
        %v1013 = vtanh.pop %v997
        %v1014 = vtanh.pop %v998
        %v1015 = vtanh.pop %v999
        %v1016 = vtanh.pop %v1000
        %v1017 = vtanh.pop %v1001
        %v1018 = vtanh.pop %v1002
        %v1019 = vtanh.pop %v1003
        %v1020 = vtanh.pop %v1004
        %v1021 = vtanh.pop %v1005
        %v1022 = vtanh.pop %v1006
        %v1023 = vtanh.pop %v1007
        %v1024 = vtanh.pop %v1008
        %v1025 = vtanh.pop %v1009
        %v1026 = vtanh.pop %v1010
        %v1027 = vmul.f32 %v1011, 0.5
        %v1028 = vmul.f32 %v1012, 0.5
        %v1029 = vmul.f32 %v1013, 0.5
        %v1030 = vmul.f32 %v1014, 0.5
        %v1031 = vmul.f32 %v1015, 0.5
        %v1032 = vmul.f32 %v1016, 0.5
        %v1033 = vmul.f32 %v1017, 0.5
        %v1034 = vmul.f32 %v1018, 0.5
        %v1035 = vmul.f32 %v1019, 0.5
        %v1036 = vmul.f32 %v1020, 0.5
        %v1037 = vmul.f32 %v1021, 0.5
        %v1038 = vmul.f32 %v1022, 0.5
        %v1039 = vmul.f32 %v1023, 0.5
        %v1040 = vmul.f32 %v1024, 0.5
        %v1041 = vmul.f32 %v1025, 0.5
        %v1042 = vmul.f32 %v1026, 0.5
        %v1043 = vadd.f32 %v1027, 0.5
        %v1044 = vadd.f32 %v1028, 0.5
        %v1045 = vadd.f32 %v1029, 0.5
        %v1046 = vadd.f32 %v1030, 0.5
        %v1047 = vadd.f32 %v1031, 0.5
        %v1048 = vadd.f32 %v1032, 0.5
        %v1049 = vadd.f32 %v1033, 0.5
        %v1050 = vadd.f32 %v1034, 0.5
        %v1051 = vadd.f32 %v1035, 0.5
        %v1052 = vadd.f32 %v1036, 0.5
        %v1053 = vadd.f32 %v1037, 0.5
        %v1054 = vadd.f32 %v1038, 0.5
        %v1055 = vadd.f32 %v1039, 0.5
        %v1056 = vadd.f32 %v1040, 0.5
        %v1057 = vadd.f32 %v1041, 0.5
        %v1058 = vadd.f32 %v1042, 0.5
        %v1059 = vmul.f32 %v917, %v1043
        %v1060 = vmul.f32 %v922, %v1044
        %v1061 = vmul.f32 %v927, %v1045
        %v1062 = vmul.f32 %v932, %v1046
        %v1063 = vmul.f32 %v937, %v1047
        %v1064 = vmul.f32 %v942, %v1048
        %v1065 = vmul.f32 %v947, %v1049
        %v1066 = vmul.f32 %v952, %v1050
        %v1067 = vmul.f32 %v957, %v1051
        %v1068 = vmul.f32 %v962, %v1052
        %v1069 = vmul.f32 %v967, %v1053
        %v1070 = vmul.f32 %v972, %v1054
        %v1071 = vmul.f32 %v977, %v1055
        %v1072 = vmul.f32 %v982, %v1056
        %v1073 = vmul.f32 %v987, %v1057
        %v1074 = vmul.f32 %v992, %v1058
        %1075 = vst [vmem:[%s241] sm:$0xff] %v1059
        %1076 = vst [vmem:[%s241 + $0x8] sm:$0xff] %v1060
        %1077 = vst [vmem:[%s241 + $0x10] sm:$0xff] %v1061
        %1078 = vst [vmem:[%s241 + $0x18] sm:$0xff] %v1062
        %1079 = vst [vmem:[%s241 + $0x20] sm:$0xff] %v1063
        %1080 = vst [vmem:[%s241 + $0x28] sm:$0xff] %v1064
        %1081 = vst [vmem:[%s241 + $0x30] sm:$0xff] %v1065
        %1082 = vst [vmem:[%s241 + $0x38] sm:$0xff] %v1066
        %1083 = vst [vmem:[%s241 + $0x40] sm:$0xff] %v1067
        %1084 = vst [vmem:[%s241 + $0x48] sm:$0xff] %v1068
        %1085 = vst [vmem:[%s241 + $0x50] sm:$0xff] %v1069
        %1086 = vst [vmem:[%s241 + $0x58] sm:$0xff] %v1070
        %1087 = vst [vmem:[%s241 + $0x60] sm:$0xff] %v1071
        %1088 = vst [vmem:[%s241 + $0x68] sm:$0xff] %v1072
        %1089 = vst [vmem:[%s241 + $0x70] sm:$0xff] %v1073
        %1090 = vst [vmem:[%s241 + $0x78] sm:$0xff] %v1074
        %s1091 = sand.u32 %s153, 1
        %s1092 = scalar_lea.sflag [#allocation3], %s1091
        %s1093 = sand.u32 %s153, 1
        %s1094 = smul.addr %s1093, 128
        %s1095 = scalar_lea.vmem [#allocation2], %s1094
        // Predicated region
        $region41: #{tpu_custom_call.1} parent=39 // pred_check
          %p1096 = pneg %p163
        $region42: #{tpu_custom_call.1} parent=39 // pred_check_branch
          %1098 = sbr.rel (%p1096) target = $region44
        $region43: #{tpu_custom_call.1} parent=39 // pred_region
          %s1099 = smul.u32 8, %s24
          %s1101 = ssub.s32 2048, 2048
          %1102 = vsyncadd %s1092, %s1101
          %s1103 = smul.addr %s1099, 2
          %s1104 = smul.addr %s23, 32
          %s1105 = sadd.s32 %s1103, %s1104
          %s1106 = smul.addr %s1105, 128
          %s1107 = scalar_lea.hbm %s5, %s1106
          %s1108 = sshll.u32 %s1095, 4
          %s1109 = int_to_ptr.vmem [resolvable:$true] %s1108
          %1114 = dma.vmem_to_hbm [thread:$0]  %s1109, 2048, %s1107, %s1092, 128, 128, 8
        $region44: #{tpu_custom_call.1} parent=39 // pred_fallthru
          _
      $region40: #{tpu_custom_call.1} parent=5 // pred_fallthru
        _
      %p1115 = scmp.le.s32.totalorder 2, %s14
      // Predicated region
      $region45: #{tpu_custom_call.1} parent=5 // pred_check
        %p1116 = pneg %p1115
      $region46: #{tpu_custom_call.1} parent=5 // pred_check_branch
        %1118 = sbr.rel (%p1116) target = $region48
      $region47: #{tpu_custom_call.1} parent=5 // pred_region
        %s1119 = ssub.s32 %s14, 2
        // Predicated region
        $region49: #{tpu_custom_call.1} parent=47 // pred_check
          %p1120 = pneg %p169
        $region50: #{tpu_custom_call.1} parent=47 // pred_check_branch
          %1122 = sbr.rel (%p1120) target = $region52
        $region51: #{tpu_custom_call.1} parent=47 // pred_region
          %s1123 = sand.u32 %s154, 1
          %s1124 = scalar_lea.sflag [#allocation3], %s1123
          %s1125 = sand.u32 %s154, 1
          %s1126 = smul.addr %s1125, 128
          %s1127 = scalar_lea.vmem [#allocation2], %s1126
          %1128 = dma.done %s1124, 2048
        $region52: #{tpu_custom_call.1} parent=47 // pred_fallthru
          _
      $region48: #{tpu_custom_call.1} parent=5 // pred_fallthru
        _
    $region6: #{tpu_custom_call.1} parent=1 // loop_footer
      %s18 = sadd.s32 1, %s14
    $region7: #{tpu_custom_call.1} parent=1 // loop_footer_branch
      %13 = sbr.rel target = $region3
    $region8: #{tpu_custom_call.1} parent=1 // loop_exit
      _
    %1129 = vsyncpa [#allocation3], 1
    %s1130 = scalar_lea.sflag [#allocation3], 1
    %1131 = vsyncpa %s1130, 1

</llo_original>
